<compile_context>
chip_gen: v6e
topology: v6e:2x2x1
jax: 0.10.0
libtpu: 0.0.40
codegen_flags: <defaults>
</compile_context>

<pallas_src>
import jax
import jax.numpy as jnp
from jax import lax
from jax.experimental import pallas as pl
from jax.experimental.pallas import tpu as pltpu

# ---- model hyper-parameters (synthetic, small) -------------------------------
INPUT_DIM = 4
HIDDEN_DIM = 32
NUM_LAYERS = 2          # kernel below is written for 2 stacked LSTM layers
DROPOUT = 0.0           # inference: dropout is identity
OUTPUT_DIM = 1

BATCH = 2
SEQ = 8


def make_lstm_kernel(T, BP, DP, H):
    """Kernel closed over static sizes (T steps, padded batch BP, padded input DP, hidden H)."""
    G = 4 * H

    def lstm_kernel(x_ref,    # [T*BP, DP]     time-major flat input (zero-padded)
                    w_ref,    # [DP + 3H, 4H]  weight stack: Wih0(pad) | Whh0 | Wih1 | Whh1
                    b_ref,    # [8, 4H]        bias/head stack: b0 | b1 | Wfc^T(pad) | bfc(pad)
                    out_ref): # [BP, 1]
        # ---- hoisted parameter loads (one vld per operand, outside the recurrence) ----
        wih0 = w_ref[0:DP, :]                    # [DP, 4H]
        whh0 = w_ref[DP:DP + H, :]               # [H, 4H]
        wih1 = w_ref[DP + H:DP + 2 * H, :]       # [H, 4H]
        whh1 = w_ref[DP + 2 * H:DP + 3 * H, :]   # [H, 4H]
        b0 = b_ref[0:1, :]                       # [1, 4H]
        b1 = b_ref[1:2, :]                       # [1, 4H]
        wfc = b_ref[2:3, 0:H]                    # [1, H]
        bfc = b_ref[3:4, 0:1]                    # [1, 1]

        # Lane-index mask selecting the "g" gate columns [2H, 3H) (built once).
        lane = lax.broadcasted_iota(jnp.int32, (BP, G), 1)
        g_mask = (lane >= 2 * H) & (lane < 3 * H)

        def cell(gin_t, h, c, whh):
            # Only the hidden projection sits on the serial dependence chain.
            gates = jnp.dot(h, whh, preferred_element_type=jnp.float32) + gin_t  # [BP, 4H]
            # Single EUP sigmoid over the whole tile; g-gate columns were pre-scaled
            # by 2 in the wrapper so tanh(x) = 2*sigmoid(2x) - 1 is a VALU fixup.
            s = jax.nn.sigmoid(gates)
            acts = jnp.where(g_mask, 2.0 * s - 1.0, s)
            i_g = acts[:, 0 * H:1 * H]
            f_g = acts[:, 1 * H:2 * H]
            g_g = acts[:, 2 * H:3 * H]
            o_g = acts[:, 3 * H:4 * H]
            c_new = f_g * c + i_g * g_g
            h_new = o_g * jnp.tanh(c_new)
            return h_new, c_new

        zeros = jnp.zeros((BP, H), jnp.float32)

        # Layer-0 input projections for all timesteps: one batched matmul, off the chain.
        gin0 = jnp.dot(x_ref[...], wih0, preferred_element_type=jnp.float32) + b0  # [T*BP, 4H]

        # -------- wavefront over time: layer-0 step t, then layer-1 step t --------
        # Layer-1 step t needs only h0_t; layer-0 step t+1 does not depend on layer-1
        # step t, so with the loop fully unrolled the scheduler overlaps the two cells.
        h0, c0 = zeros, zeros
        h1, c1 = zeros, zeros
        for t in range(T):                               # T static -> fully unrolled
            h0, c0 = cell(gin0[t * BP:(t + 1) * BP, :], h0, c0, whh0)
            gin1_t = jnp.dot(h0, wih1, preferred_element_type=jnp.float32) + b1
            h1, c1 = cell(gin1_t, h1, c1, whh1)
        # TODO(synk): inter-layer dropout omitted (inference mode => identity).

        # ---------------- linear head (OUTPUT_DIM == 1) ----------------
        # VPU broadcast-multiply + lane reduction instead of a degenerate N=1 MXU matmul.
        out_ref[...] = (jnp.sum(h1 * wfc, axis=-1, keepdims=True) + bfc).astype(out_ref.dtype)

    return lstm_kernel


def _scale_g_cols(w, H):
    """Multiply the g-gate columns [2H, 3H) by 2 (enables tanh(x) = 2*sigmoid(2x) - 1)."""
    return w.at[..., 2 * H:3 * H].multiply(2.0)


def wrapped_lstm_forward(x, params):
    """x: [B, T, D] float32 (batch_first). Returns [B, OUTPUT_DIM]."""
    (wih0, whh0, b0, wih1, whh1, b1, wfc, bfc) = params
    B, T, D = x.shape
    H = whh0.shape[0]
    OUT = wfc.shape[1]
    assert OUT == 1, "kernel head path is specialized for OUTPUT_DIM == 1"

    BP = ((B + 7) // 8) * 8          # batch padded to sublane multiple
    DP = ((D + 7) // 8) * 8          # input dim padded to sublane multiple
    G = 4 * H

    # Pre-scale g-gate columns of Wih/Whh/bias (single-sigmoid trick, exact math).
    wih0s, whh0s, b0s = _scale_g_cols(wih0, H), _scale_g_cols(whh0, H), _scale_g_cols(b0, H)
    wih1s, whh1s, b1s = _scale_g_cols(wih1, H), _scale_g_cols(whh1, H), _scale_g_cols(b1, H)

    # Pack matrices into one sublane-aligned weight stack (fewer, larger DMAs).
    wih0p = jnp.zeros((DP, G), jnp.float32).at[:D, :].set(wih0s)
    w_stack = jnp.concatenate([wih0p, whh0s, wih1s, whh1s], axis=0)   # [DP+3H, 4H]

    # Bias/head stack: row 0 = b0, 1 = b1, 2 = Wfc^T (lane-padded), 3 = bfc (lane-padded).
    b_stack = jnp.zeros((8, G), jnp.float32)
    b_stack = b_stack.at[0, :].set(b0s[0])
    b_stack = b_stack.at[1, :].set(b1s[0])
    b_stack = b_stack.at[2, :H].set(wfc[:, 0])
    b_stack = b_stack.at[3, 0].set(bfc[0, 0])

    # Time-major layout, batch padded to BP, feature dim zero-padded to DP.
    x_tm = jnp.transpose(x, (1, 0, 2))                                # [T, B, D]
    x_tm = jnp.pad(x_tm, ((0, 0), (0, BP - B), (0, DP - D)))
    x_flat = x_tm.reshape(T * BP, DP)                                 # [T*BP, DP]

    vmem = pl.BlockSpec(memory_space=pltpu.MemorySpace.VMEM)
    out = pl.pallas_call(
        make_lstm_kernel(T, BP, DP, H),
        out_shape=jax.ShapeDtypeStruct((BP, OUT), jnp.float32),
        in_specs=[vmem, vmem, vmem],
        out_specs=vmem,
    )(x_flat, w_stack, b_stack)
    # TODO(synk): for large batch, add a grid over batch tiles with
    # dimension_semantics=("parallel",) to use both TensorCores on v7x.
    return out[:B]


# ------------------------- pure-JAX reference (sanity) -----------------------
def reference_forward(x, params):
    (wih0, whh0, b0, wih1, whh1, b1, wfc, bfc) = params
    B, T, D = x.shape
    H = whh0.shape[0]

    def run_layer(seq_in, wih, whh, b):
        h = jnp.zeros((B, H), jnp.float32)
        c = jnp.zeros((B, H), jnp.float32)
        outs = []
        for t in range(T):
            gates = seq_in[:, t, :] @ wih + h @ whh + b
            i_g = jax.nn.sigmoid(gates[:, 0 * H:1 * H])
            f_g = jax.nn.sigmoid(gates[:, 1 * H:2 * H])
            g_g = jnp.tanh(gates[:, 2 * H:3 * H])
            o_g = jax.nn.sigmoid(gates[:, 3 * H:4 * H])
            c = f_g * c + i_g * g_g
            h = o_g * jnp.tanh(c)
            outs.append(h)
        return jnp.stack(outs, axis=1), h

    seq0, _ = run_layer(x, wih0, whh0, b0)
    _, h_last = run_layer(seq0, wih1, whh1, b1)
    return h_last @ wfc + bfc


if __name__ == "__main__":
    key = jax.random.PRNGKey(0)
    ks = jax.random.split(key, 9)
    D, H, OUT = INPUT_DIM, HIDDEN_DIM, OUTPUT_DIM
    scale = 0.1

    # Deterministic synthetic parameters (PyTorch shapes, stored pre-transposed
    # for the kernel: W_ih^T, W_hh^T, W_fc^T; biases are b_ih + b_hh combined).
    wih0 = scale * jax.random.normal(ks[0], (D, 4 * H), jnp.float32)
    whh0 = scale * jax.random.normal(ks[1], (H, 4 * H), jnp.float32)
    b0 = scale * jax.random.normal(ks[2], (1, 4 * H), jnp.float32)
    wih1 = scale * jax.random.normal(ks[3], (H, 4 * H), jnp.float32)
    whh1 = scale * jax.random.normal(ks[4], (H, 4 * H), jnp.float32)
    b1 = scale * jax.random.normal(ks[5], (1, 4 * H), jnp.float32)
    wfc = scale * jax.random.normal(ks[6], (H, OUT), jnp.float32)
    bfc = scale * jax.random.normal(ks[7], (1, OUT), jnp.float32)
    params = (wih0, whh0, b0, wih1, whh1, b1, wfc, bfc)

    x = jax.random.normal(ks[8], (BATCH, SEQ, D), jnp.float32)

    out = wrapped_lstm_forward(x, params)
    out = jax.block_until_ready(out)

    ref = reference_forward(x, params)
    assert out.shape == (BATCH, OUT)
    assert jnp.allclose(out, ref, atol=1e-4, rtol=1e-4), (out, ref)

    print("KERNEL_OK")
</pallas_src>

<mosaic_0001>
module attributes {stable_mosaic.version = 11 : i64} {
  func.func @lstm_kernel(%arg0: memref<64x8xf32, #tpu.memory_space<vmem>>, %arg1: memref<104x128xf32, #tpu.memory_space<vmem>>, %arg2: memref<8x128xf32, #tpu.memory_space<vmem>>, %arg3: memref<8x1xf32, #tpu.memory_space<vmem>>) attributes {dimension_semantics = [], scalar_prefetch = 0 : i64, scratch_operands = 0 : i64, tpu.core_type = #tpu.core_type<tc>} {
    %c0 = arith.constant 0 : index
    %c0_0 = arith.constant 0 : index
    %0 = vector.load %arg1[%c0, %c0_0] : memref<104x128xf32, #tpu.memory_space<vmem>>, vector<8x128xf32>
    %c8 = arith.constant 8 : index
    %c0_1 = arith.constant 0 : index
    %1 = vector.load %arg1[%c8, %c0_1] : memref<104x128xf32, #tpu.memory_space<vmem>>, vector<32x128xf32>
    %c40 = arith.constant 40 : index
    %c0_2 = arith.constant 0 : index
    %2 = vector.load %arg1[%c40, %c0_2] : memref<104x128xf32, #tpu.memory_space<vmem>>, vector<32x128xf32>
    %c72 = arith.constant 72 : index
    %c0_3 = arith.constant 0 : index
    %3 = vector.load %arg1[%c72, %c0_3] : memref<104x128xf32, #tpu.memory_space<vmem>>, vector<32x128xf32>
    %c0_4 = arith.constant 0 : index
    %c0_5 = arith.constant 0 : index
    %4 = vector.load %arg2[%c0_4, %c0_5] : memref<8x128xf32, #tpu.memory_space<vmem>>, vector<1x128xf32>
    %c1 = arith.constant 1 : index
    %c0_6 = arith.constant 0 : index
    %5 = vector.load %arg2[%c1, %c0_6] : memref<8x128xf32, #tpu.memory_space<vmem>>, vector<1x128xf32>
    %c2 = arith.constant 2 : index
    %c0_7 = arith.constant 0 : index
    %6 = vector.load %arg2[%c2, %c0_7] : memref<8x128xf32, #tpu.memory_space<vmem>>, vector<1x32xf32>
    %c3 = arith.constant 3 : index
    %c0_8 = arith.constant 0 : index
    %7 = vector.load %arg2[%c3, %c0_8] : memref<8x128xf32, #tpu.memory_space<vmem>>, vector<1x1xf32>
    %8 = tpu.iota {dimensions = array<i32: 1>} : vector<8x128xi32>
    %c64_i32 = arith.constant 64 : i32
    %9 = vector.broadcast %c64_i32 : i32 to vector<8x128xi32>
    %10 = arith.cmpi sge, %8, %9 : vector<8x128xi32>
    %c96_i32 = arith.constant 96 : i32
    %11 = vector.broadcast %c96_i32 : i32 to vector<8x128xi32>
    %12 = arith.cmpi slt, %8, %11 : vector<8x128xi32>
    %13 = arith.andi %10, %12 : vector<8x128xi1>
    %cst = arith.constant 0.000000e+00 : f32
    %14 = vector.broadcast %cst : f32 to vector<8x32xf32>
    %c0_9 = arith.constant 0 : index
    %c0_10 = arith.constant 0 : index
    %15 = vector.load %arg0[%c0_9, %c0_10] : memref<64x8xf32, #tpu.memory_space<vmem>>, vector<64x8xf32>
    %cst_11 = arith.constant dense<0.000000e+00> : vector<64x128xf32>
    %16 = tpu.matmul %15, %0, %cst_11 {dimension_numbers = #tpu.dot_dimension_numbers<[1], [0], [0], [1], [0, 0, 1, 1], [], []>} : vector<64x8xf32>, vector<8x128xf32>, vector<64x128xf32> -> vector<64x128xf32>
    %17 = vector.broadcast %4 : vector<1x128xf32> to vector<64x128xf32>
    %18 = arith.addf %16, %17 : vector<64x128xf32>
    %19 = vector.extract_strided_slice %18 {offsets = [0, 0], sizes = [8, 128], strides = [1, 1]} : vector<64x128xf32> to vector<8x128xf32>
    %cst_12 = arith.constant dense<0.000000e+00> : vector<8x128xf32>
    %20 = tpu.matmul %14, %1, %cst_12 {dimension_numbers = #tpu.dot_dimension_numbers<[1], [0], [0], [1], [0, 0, 1, 1], [], []>} : vector<8x32xf32>, vector<32x128xf32>, vector<8x128xf32> -> vector<8x128xf32>
    %21 = arith.addf %20, %19 : vector<8x128xf32>
    %22 = arith.negf %21 : vector<8x128xf32>
    %23 = math.exp %22 : vector<8x128xf32>
    %cst_13 = arith.constant 1.000000e+00 : f32
    %24 = vector.broadcast %cst_13 : f32 to vector<8x128xf32>
    %25 = arith.addf %24, %23 : vector<8x128xf32>
    %26 = arith.divf %24, %25 : vector<8x128xf32>
    %cst_14 = arith.constant 2.000000e+00 : f32
    %27 = vector.broadcast %cst_14 : f32 to vector<8x128xf32>
    %28 = arith.mulf %27, %26 : vector<8x128xf32>
    %cst_15 = arith.constant 1.000000e+00 : f32
    %29 = vector.broadcast %cst_15 : f32 to vector<8x128xf32>
    %30 = arith.subf %28, %29 : vector<8x128xf32>
    %31 = arith.select %13, %30, %26 : vector<8x128xi1>, vector<8x128xf32>
    %32 = vector.extract_strided_slice %31 {offsets = [0, 0], sizes = [8, 32], strides = [1, 1]} : vector<8x128xf32> to vector<8x32xf32>
    %33 = vector.extract_strided_slice %31 {offsets = [0, 32], sizes = [8, 32], strides = [1, 1]} : vector<8x128xf32> to vector<8x32xf32>
    %34 = vector.extract_strided_slice %31 {offsets = [0, 64], sizes = [8, 32], strides = [1, 1]} : vector<8x128xf32> to vector<8x32xf32>
    %35 = vector.extract_strided_slice %31 {offsets = [0, 96], sizes = [8, 32], strides = [1, 1]} : vector<8x128xf32> to vector<8x32xf32>
    %36 = arith.mulf %33, %14 : vector<8x32xf32>
    %37 = arith.mulf %32, %34 : vector<8x32xf32>
    %38 = arith.addf %36, %37 : vector<8x32xf32>
    %39 = math.tanh %38 : vector<8x32xf32>
    %40 = arith.mulf %35, %39 : vector<8x32xf32>
    %cst_16 = arith.constant dense<0.000000e+00> : vector<8x128xf32>
    %41 = tpu.matmul %40, %2, %cst_16 {dimension_numbers = #tpu.dot_dimension_numbers<[1], [0], [0], [1], [0, 0, 1, 1], [], []>} : vector<8x32xf32>, vector<32x128xf32>, vector<8x128xf32> -> vector<8x128xf32>
    %42 = vector.broadcast %5 : vector<1x128xf32> to vector<8x128xf32>
    %43 = arith.addf %41, %42 : vector<8x128xf32>
    %cst_17 = arith.constant dense<0.000000e+00> : vector<8x128xf32>
    %44 = tpu.matmul %14, %3, %cst_17 {dimension_numbers = #tpu.dot_dimension_numbers<[1], [0], [0], [1], [0, 0, 1, 1], [], []>} : vector<8x32xf32>, vector<32x128xf32>, vector<8x128xf32> -> vector<8x128xf32>
    %45 = arith.addf %44, %43 : vector<8x128xf32>
    %46 = arith.negf %45 : vector<8x128xf32>
    %47 = math.exp %46 : vector<8x128xf32>
    %cst_18 = arith.constant 1.000000e+00 : f32
    %48 = vector.broadcast %cst_18 : f32 to vector<8x128xf32>
    %49 = arith.addf %48, %47 : vector<8x128xf32>
    %50 = arith.divf %48, %49 : vector<8x128xf32>
    %cst_19 = arith.constant 2.000000e+00 : f32
    %51 = vector.broadcast %cst_19 : f32 to vector<8x128xf32>
    %52 = arith.mulf %51, %50 : vector<8x128xf32>
    %cst_20 = arith.constant 1.000000e+00 : f32
    %53 = vector.broadcast %cst_20 : f32 to vector<8x128xf32>
    %54 = arith.subf %52, %53 : vector<8x128xf32>
    %55 = arith.select %13, %54, %50 : vector<8x128xi1>, vector<8x128xf32>
    %56 = vector.extract_strided_slice %55 {offsets = [0, 0], sizes = [8, 32], strides = [1, 1]} : vector<8x128xf32> to vector<8x32xf32>
    %57 = vector.extract_strided_slice %55 {offsets = [0, 32], sizes = [8, 32], strides = [1, 1]} : vector<8x128xf32> to vector<8x32xf32>
    %58 = vector.extract_strided_slice %55 {offsets = [0, 64], sizes = [8, 32], strides = [1, 1]} : vector<8x128xf32> to vector<8x32xf32>
    %59 = vector.extract_strided_slice %55 {offsets = [0, 96], sizes = [8, 32], strides = [1, 1]} : vector<8x128xf32> to vector<8x32xf32>
    %60 = arith.mulf %57, %14 : vector<8x32xf32>
    %61 = arith.mulf %56, %58 : vector<8x32xf32>
    %62 = arith.addf %60, %61 : vector<8x32xf32>
    %63 = math.tanh %62 : vector<8x32xf32>
    %64 = arith.mulf %59, %63 : vector<8x32xf32>
    %65 = vector.extract_strided_slice %18 {offsets = [8, 0], sizes = [8, 128], strides = [1, 1]} : vector<64x128xf32> to vector<8x128xf32>
    %cst_21 = arith.constant dense<0.000000e+00> : vector<8x128xf32>
    %66 = tpu.matmul %40, %1, %cst_21 {dimension_numbers = #tpu.dot_dimension_numbers<[1], [0], [0], [1], [0, 0, 1, 1], [], []>} : vector<8x32xf32>, vector<32x128xf32>, vector<8x128xf32> -> vector<8x128xf32>
    %67 = arith.addf %66, %65 : vector<8x128xf32>
    %68 = arith.negf %67 : vector<8x128xf32>
    %69 = math.exp %68 : vector<8x128xf32>
    %cst_22 = arith.constant 1.000000e+00 : f32
    %70 = vector.broadcast %cst_22 : f32 to vector<8x128xf32>
    %71 = arith.addf %70, %69 : vector<8x128xf32>
    %72 = arith.divf %70, %71 : vector<8x128xf32>
    %cst_23 = arith.constant 2.000000e+00 : f32
    %73 = vector.broadcast %cst_23 : f32 to vector<8x128xf32>
    %74 = arith.mulf %73, %72 : vector<8x128xf32>
    %cst_24 = arith.constant 1.000000e+00 : f32
    %75 = vector.broadcast %cst_24 : f32 to vector<8x128xf32>
    %76 = arith.subf %74, %75 : vector<8x128xf32>
    %77 = arith.select %13, %76, %72 : vector<8x128xi1>, vector<8x128xf32>
    %78 = vector.extract_strided_slice %77 {offsets = [0, 0], sizes = [8, 32], strides = [1, 1]} : vector<8x128xf32> to vector<8x32xf32>
    %79 = vector.extract_strided_slice %77 {offsets = [0, 32], sizes = [8, 32], strides = [1, 1]} : vector<8x128xf32> to vector<8x32xf32>
    %80 = vector.extract_strided_slice %77 {offsets = [0, 64], sizes = [8, 32], strides = [1, 1]} : vector<8x128xf32> to vector<8x32xf32>
    %81 = vector.extract_strided_slice %77 {offsets = [0, 96], sizes = [8, 32], strides = [1, 1]} : vector<8x128xf32> to vector<8x32xf32>
    %82 = arith.mulf %79, %38 : vector<8x32xf32>
    %83 = arith.mulf %78, %80 : vector<8x32xf32>
    %84 = arith.addf %82, %83 : vector<8x32xf32>
    %85 = math.tanh %84 : vector<8x32xf32>
    %86 = arith.mulf %81, %85 : vector<8x32xf32>
    %cst_25 = arith.constant dense<0.000000e+00> : vector<8x128xf32>
    %87 = tpu.matmul %86, %2, %cst_25 {dimension_numbers = #tpu.dot_dimension_numbers<[1], [0], [0], [1], [0, 0, 1, 1], [], []>} : vector<8x32xf32>, vector<32x128xf32>, vector<8x128xf32> -> vector<8x128xf32>
    %88 = vector.broadcast %5 : vector<1x128xf32> to vector<8x128xf32>
    %89 = arith.addf %87, %88 : vector<8x128xf32>
    %cst_26 = arith.constant dense<0.000000e+00> : vector<8x128xf32>
    %90 = tpu.matmul %64, %3, %cst_26 {dimension_numbers = #tpu.dot_dimension_numbers<[1], [0], [0], [1], [0, 0, 1, 1], [], []>} : vector<8x32xf32>, vector<32x128xf32>, vector<8x128xf32> -> vector<8x128xf32>
    %91 = arith.addf %90, %89 : vector<8x128xf32>
    %92 = arith.negf %91 : vector<8x128xf32>
    %93 = math.exp %92 : vector<8x128xf32>
    %cst_27 = arith.constant 1.000000e+00 : f32
    %94 = vector.broadcast %cst_27 : f32 to vector<8x128xf32>
    %95 = arith.addf %94, %93 : vector<8x128xf32>
    %96 = arith.divf %94, %95 : vector<8x128xf32>
    %cst_28 = arith.constant 2.000000e+00 : f32
    %97 = vector.broadcast %cst_28 : f32 to vector<8x128xf32>
    %98 = arith.mulf %97, %96 : vector<8x128xf32>
    %cst_29 = arith.constant 1.000000e+00 : f32
    %99 = vector.broadcast %cst_29 : f32 to vector<8x128xf32>
    %100 = arith.subf %98, %99 : vector<8x128xf32>
    %101 = arith.select %13, %100, %96 : vector<8x128xi1>, vector<8x128xf32>
    %102 = vector.extract_strided_slice %101 {offsets = [0, 0], sizes = [8, 32], strides = [1, 1]} : vector<8x128xf32> to vector<8x32xf32>
    %103 = vector.extract_strided_slice %101 {offsets = [0, 32], sizes = [8, 32], strides = [1, 1]} : vector<8x128xf32> to vector<8x32xf32>
    %104 = vector.extract_strided_slice %101 {offsets = [0, 64], sizes = [8, 32], strides = [1, 1]} : vector<8x128xf32> to vector<8x32xf32>
    %105 = vector.extract_strided_slice %101 {offsets = [0, 96], sizes = [8, 32], strides = [1, 1]} : vector<8x128xf32> to vector<8x32xf32>
    %106 = arith.mulf %103, %62 : vector<8x32xf32>
    %107 = arith.mulf %102, %104 : vector<8x32xf32>
    %108 = arith.addf %106, %107 : vector<8x32xf32>
    %109 = math.tanh %108 : vector<8x32xf32>
    %110 = arith.mulf %105, %109 : vector<8x32xf32>
    %111 = vector.extract_strided_slice %18 {offsets = [16, 0], sizes = [8, 128], strides = [1, 1]} : vector<64x128xf32> to vector<8x128xf32>
    %cst_30 = arith.constant dense<0.000000e+00> : vector<8x128xf32>
    %112 = tpu.matmul %86, %1, %cst_30 {dimension_numbers = #tpu.dot_dimension_numbers<[1], [0], [0], [1], [0, 0, 1, 1], [], []>} : vector<8x32xf32>, vector<32x128xf32>, vector<8x128xf32> -> vector<8x128xf32>
    %113 = arith.addf %112, %111 : vector<8x128xf32>
    %114 = arith.negf %113 : vector<8x128xf32>
    %115 = math.exp %114 : vector<8x128xf32>
    %cst_31 = arith.constant 1.000000e+00 : f32
    %116 = vector.broadcast %cst_31 : f32 to vector<8x128xf32>
    %117 = arith.addf %116, %115 : vector<8x128xf32>
    %118 = arith.divf %116, %117 : vector<8x128xf32>
    %cst_32 = arith.constant 2.000000e+00 : f32
    %119 = vector.broadcast %cst_32 : f32 to vector<8x128xf32>
    %120 = arith.mulf %119, %118 : vector<8x128xf32>
    %cst_33 = arith.constant 1.000000e+00 : f32
    %121 = vector.broadcast %cst_33 : f32 to vector<8x128xf32>
    %122 = arith.subf %120, %121 : vector<8x128xf32>
    %123 = arith.select %13, %122, %118 : vector<8x128xi1>, vector<8x128xf32>
    %124 = vector.extract_strided_slice %123 {offsets = [0, 0], sizes = [8, 32], strides = [1, 1]} : vector<8x128xf32> to vector<8x32xf32>
    %125 = vector.extract_strided_slice %123 {offsets = [0, 32], sizes = [8, 32], strides = [1, 1]} : vector<8x128xf32> to vector<8x32xf32>
    %126 = vector.extract_strided_slice %123 {offsets = [0, 64], sizes = [8, 32], strides = [1, 1]} : vector<8x128xf32> to vector<8x32xf32>
    %127 = vector.extract_strided_slice %123 {offsets = [0, 96], sizes = [8, 32], strides = [1, 1]} : vector<8x128xf32> to vector<8x32xf32>
    %128 = arith.mulf %125, %84 : vector<8x32xf32>
    %129 = arith.mulf %124, %126 : vector<8x32xf32>
    %130 = arith.addf %128, %129 : vector<8x32xf32>
    %131 = math.tanh %130 : vector<8x32xf32>
    %132 = arith.mulf %127, %131 : vector<8x32xf32>
    %cst_34 = arith.constant dense<0.000000e+00> : vector<8x128xf32>
    %133 = tpu.matmul %132, %2, %cst_34 {dimension_numbers = #tpu.dot_dimension_numbers<[1], [0], [0], [1], [0, 0, 1, 1], [], []>} : vector<8x32xf32>, vector<32x128xf32>, vector<8x128xf32> -> vector<8x128xf32>
    %134 = vector.broadcast %5 : vector<1x128xf32> to vector<8x128xf32>
    %135 = arith.addf %133, %134 : vector<8x128xf32>
    %cst_35 = arith.constant dense<0.000000e+00> : vector<8x128xf32>
    %136 = tpu.matmul %110, %3, %cst_35 {dimension_numbers = #tpu.dot_dimension_numbers<[1], [0], [0], [1], [0, 0, 1, 1], [], []>} : vector<8x32xf32>, vector<32x128xf32>, vector<8x128xf32> -> vector<8x128xf32>
    %137 = arith.addf %136, %135 : vector<8x128xf32>
    %138 = arith.negf %137 : vector<8x128xf32>
    %139 = math.exp %138 : vector<8x128xf32>
    %cst_36 = arith.constant 1.000000e+00 : f32
    %140 = vector.broadcast %cst_36 : f32 to vector<8x128xf32>
    %141 = arith.addf %140, %139 : vector<8x128xf32>
    %142 = arith.divf %140, %141 : vector<8x128xf32>
    %cst_37 = arith.constant 2.000000e+00 : f32
    %143 = vector.broadcast %cst_37 : f32 to vector<8x128xf32>
    %144 = arith.mulf %143, %142 : vector<8x128xf32>
    %cst_38 = arith.constant 1.000000e+00 : f32
    %145 = vector.broadcast %cst_38 : f32 to vector<8x128xf32>
    %146 = arith.subf %144, %145 : vector<8x128xf32>
    %147 = arith.select %13, %146, %142 : vector<8x128xi1>, vector<8x128xf32>
    %148 = vector.extract_strided_slice %147 {offsets = [0, 0], sizes = [8, 32], strides = [1, 1]} : vector<8x128xf32> to vector<8x32xf32>
    %149 = vector.extract_strided_slice %147 {offsets = [0, 32], sizes = [8, 32], strides = [1, 1]} : vector<8x128xf32> to vector<8x32xf32>
    %150 = vector.extract_strided_slice %147 {offsets = [0, 64], sizes = [8, 32], strides = [1, 1]} : vector<8x128xf32> to vector<8x32xf32>
    %151 = vector.extract_strided_slice %147 {offsets = [0, 96], sizes = [8, 32], strides = [1, 1]} : vector<8x128xf32> to vector<8x32xf32>
    %152 = arith.mulf %149, %108 : vector<8x32xf32>
    %153 = arith.mulf %148, %150 : vector<8x32xf32>
    %154 = arith.addf %152, %153 : vector<8x32xf32>
    %155 = math.tanh %154 : vector<8x32xf32>
    %156 = arith.mulf %151, %155 : vector<8x32xf32>
    %157 = vector.extract_strided_slice %18 {offsets = [24, 0], sizes = [8, 128], strides = [1, 1]} : vector<64x128xf32> to vector<8x128xf32>
    %cst_39 = arith.constant dense<0.000000e+00> : vector<8x128xf32>
    %158 = tpu.matmul %132, %1, %cst_39 {dimension_numbers = #tpu.dot_dimension_numbers<[1], [0], [0], [1], [0, 0, 1, 1], [], []>} : vector<8x32xf32>, vector<32x128xf32>, vector<8x128xf32> -> vector<8x128xf32>
    %159 = arith.addf %158, %157 : vector<8x128xf32>
    %160 = arith.negf %159 : vector<8x128xf32>
    %161 = math.exp %160 : vector<8x128xf32>
    %cst_40 = arith.constant 1.000000e+00 : f32
    %162 = vector.broadcast %cst_40 : f32 to vector<8x128xf32>
    %163 = arith.addf %162, %161 : vector<8x128xf32>
    %164 = arith.divf %162, %163 : vector<8x128xf32>
    %cst_41 = arith.constant 2.000000e+00 : f32
    %165 = vector.broadcast %cst_41 : f32 to vector<8x128xf32>
    %166 = arith.mulf %165, %164 : vector<8x128xf32>
    %cst_42 = arith.constant 1.000000e+00 : f32
    %167 = vector.broadcast %cst_42 : f32 to vector<8x128xf32>
    %168 = arith.subf %166, %167 : vector<8x128xf32>
    %169 = arith.select %13, %168, %164 : vector<8x128xi1>, vector<8x128xf32>
    %170 = vector.extract_strided_slice %169 {offsets = [0, 0], sizes = [8, 32], strides = [1, 1]} : vector<8x128xf32> to vector<8x32xf32>
    %171 = vector.extract_strided_slice %169 {offsets = [0, 32], sizes = [8, 32], strides = [1, 1]} : vector<8x128xf32> to vector<8x32xf32>
    %172 = vector.extract_strided_slice %169 {offsets = [0, 64], sizes = [8, 32], strides = [1, 1]} : vector<8x128xf32> to vector<8x32xf32>
    %173 = vector.extract_strided_slice %169 {offsets = [0, 96], sizes = [8, 32], strides = [1, 1]} : vector<8x128xf32> to vector<8x32xf32>
    %174 = arith.mulf %171, %130 : vector<8x32xf32>
    %175 = arith.mulf %170, %172 : vector<8x32xf32>
    %176 = arith.addf %174, %175 : vector<8x32xf32>
    %177 = math.tanh %176 : vector<8x32xf32>
    %178 = arith.mulf %173, %177 : vector<8x32xf32>
    %cst_43 = arith.constant dense<0.000000e+00> : vector<8x128xf32>
    %179 = tpu.matmul %178, %2, %cst_43 {dimension_numbers = #tpu.dot_dimension_numbers<[1], [0], [0], [1], [0, 0, 1, 1], [], []>} : vector<8x32xf32>, vector<32x128xf32>, vector<8x128xf32> -> vector<8x128xf32>
    %180 = vector.broadcast %5 : vector<1x128xf32> to vector<8x128xf32>
    %181 = arith.addf %179, %180 : vector<8x128xf32>
    %cst_44 = arith.constant dense<0.000000e+00> : vector<8x128xf32>
    %182 = tpu.matmul %156, %3, %cst_44 {dimension_numbers = #tpu.dot_dimension_numbers<[1], [0], [0], [1], [0, 0, 1, 1], [], []>} : vector<8x32xf32>, vector<32x128xf32>, vector<8x128xf32> -> vector<8x128xf32>
    %183 = arith.addf %182, %181 : vector<8x128xf32>
    %184 = arith.negf %183 : vector<8x128xf32>
    %185 = math.exp %184 : vector<8x128xf32>
    %cst_45 = arith.constant 1.000000e+00 : f32
    %186 = vector.broadcast %cst_45 : f32 to vector<8x128xf32>
    %187 = arith.addf %186, %185 : vector<8x128xf32>
    %188 = arith.divf %186, %187 : vector<8x128xf32>
    %cst_46 = arith.constant 2.000000e+00 : f32
    %189 = vector.broadcast %cst_46 : f32 to vector<8x128xf32>
    %190 = arith.mulf %189, %188 : vector<8x128xf32>
    %cst_47 = arith.constant 1.000000e+00 : f32
    %191 = vector.broadcast %cst_47 : f32 to vector<8x128xf32>
    %192 = arith.subf %190, %191 : vector<8x128xf32>
    %193 = arith.select %13, %192, %188 : vector<8x128xi1>, vector<8x128xf32>
    %194 = vector.extract_strided_slice %193 {offsets = [0, 0], sizes = [8, 32], strides = [1, 1]} : vector<8x128xf32> to vector<8x32xf32>
    %195 = vector.extract_strided_slice %193 {offsets = [0, 32], sizes = [8, 32], strides = [1, 1]} : vector<8x128xf32> to vector<8x32xf32>
    %196 = vector.extract_strided_slice %193 {offsets = [0, 64], sizes = [8, 32], strides = [1, 1]} : vector<8x128xf32> to vector<8x32xf32>
    %197 = vector.extract_strided_slice %193 {offsets = [0, 96], sizes = [8, 32], strides = [1, 1]} : vector<8x128xf32> to vector<8x32xf32>
    %198 = arith.mulf %195, %154 : vector<8x32xf32>
    %199 = arith.mulf %194, %196 : vector<8x32xf32>
    %200 = arith.addf %198, %199 : vector<8x32xf32>
    %201 = math.tanh %200 : vector<8x32xf32>
    %202 = arith.mulf %197, %201 : vector<8x32xf32>
    %203 = vector.extract_strided_slice %18 {offsets = [32, 0], sizes = [8, 128], strides = [1, 1]} : vector<64x128xf32> to vector<8x128xf32>
    %cst_48 = arith.constant dense<0.000000e+00> : vector<8x128xf32>
    %204 = tpu.matmul %178, %1, %cst_48 {dimension_numbers = #tpu.dot_dimension_numbers<[1], [0], [0], [1], [0, 0, 1, 1], [], []>} : vector<8x32xf32>, vector<32x128xf32>, vector<8x128xf32> -> vector<8x128xf32>
    %205 = arith.addf %204, %203 : vector<8x128xf32>
    %206 = arith.negf %205 : vector<8x128xf32>
    %207 = math.exp %206 : vector<8x128xf32>
    %cst_49 = arith.constant 1.000000e+00 : f32
    %208 = vector.broadcast %cst_49 : f32 to vector<8x128xf32>
    %209 = arith.addf %208, %207 : vector<8x128xf32>
    %210 = arith.divf %208, %209 : vector<8x128xf32>
    %cst_50 = arith.constant 2.000000e+00 : f32
    %211 = vector.broadcast %cst_50 : f32 to vector<8x128xf32>
    %212 = arith.mulf %211, %210 : vector<8x128xf32>
    %cst_51 = arith.constant 1.000000e+00 : f32
    %213 = vector.broadcast %cst_51 : f32 to vector<8x128xf32>
    %214 = arith.subf %212, %213 : vector<8x128xf32>
    %215 = arith.select %13, %214, %210 : vector<8x128xi1>, vector<8x128xf32>
    %216 = vector.extract_strided_slice %215 {offsets = [0, 0], sizes = [8, 32], strides = [1, 1]} : vector<8x128xf32> to vector<8x32xf32>
    %217 = vector.extract_strided_slice %215 {offsets = [0, 32], sizes = [8, 32], strides = [1, 1]} : vector<8x128xf32> to vector<8x32xf32>
    %218 = vector.extract_strided_slice %215 {offsets = [0, 64], sizes = [8, 32], strides = [1, 1]} : vector<8x128xf32> to vector<8x32xf32>
    %219 = vector.extract_strided_slice %215 {offsets = [0, 96], sizes = [8, 32], strides = [1, 1]} : vector<8x128xf32> to vector<8x32xf32>
    %220 = arith.mulf %217, %176 : vector<8x32xf32>
    %221 = arith.mulf %216, %218 : vector<8x32xf32>
    %222 = arith.addf %220, %221 : vector<8x32xf32>
    %223 = math.tanh %222 : vector<8x32xf32>
    %224 = arith.mulf %219, %223 : vector<8x32xf32>
    %cst_52 = arith.constant dense<0.000000e+00> : vector<8x128xf32>
    %225 = tpu.matmul %224, %2, %cst_52 {dimension_numbers = #tpu.dot_dimension_numbers<[1], [0], [0], [1], [0, 0, 1, 1], [], []>} : vector<8x32xf32>, vector<32x128xf32>, vector<8x128xf32> -> vector<8x128xf32>
    %226 = vector.broadcast %5 : vector<1x128xf32> to vector<8x128xf32>
    %227 = arith.addf %225, %226 : vector<8x128xf32>
    %cst_53 = arith.constant dense<0.000000e+00> : vector<8x128xf32>
    %228 = tpu.matmul %202, %3, %cst_53 {dimension_numbers = #tpu.dot_dimension_numbers<[1], [0], [0], [1], [0, 0, 1, 1], [], []>} : vector<8x32xf32>, vector<32x128xf32>, vector<8x128xf32> -> vector<8x128xf32>
    %229 = arith.addf %228, %227 : vector<8x128xf32>
    %230 = arith.negf %229 : vector<8x128xf32>
    %231 = math.exp %230 : vector<8x128xf32>
    %cst_54 = arith.constant 1.000000e+00 : f32
    %232 = vector.broadcast %cst_54 : f32 to vector<8x128xf32>
    %233 = arith.addf %232, %231 : vector<8x128xf32>
    %234 = arith.divf %232, %233 : vector<8x128xf32>
    %cst_55 = arith.constant 2.000000e+00 : f32
    %235 = vector.broadcast %cst_55 : f32 to vector<8x128xf32>
    %236 = arith.mulf %235, %234 : vector<8x128xf32>
    %cst_56 = arith.constant 1.000000e+00 : f32
    %237 = vector.broadcast %cst_56 : f32 to vector<8x128xf32>
    %238 = arith.subf %236, %237 : vector<8x128xf32>
    %239 = arith.select %13, %238, %234 : vector<8x128xi1>, vector<8x128xf32>
    %240 = vector.extract_strided_slice %239 {offsets = [0, 0], sizes = [8, 32], strides = [1, 1]} : vector<8x128xf32> to vector<8x32xf32>
    %241 = vector.extract_strided_slice %239 {offsets = [0, 32], sizes = [8, 32], strides = [1, 1]} : vector<8x128xf32> to vector<8x32xf32>
    %242 = vector.extract_strided_slice %239 {offsets = [0, 64], sizes = [8, 32], strides = [1, 1]} : vector<8x128xf32> to vector<8x32xf32>
    %243 = vector.extract_strided_slice %239 {offsets = [0, 96], sizes = [8, 32], strides = [1, 1]} : vector<8x128xf32> to vector<8x32xf32>
    %244 = arith.mulf %241, %200 : vector<8x32xf32>
    %245 = arith.mulf %240, %242 : vector<8x32xf32>
    %246 = arith.addf %244, %245 : vector<8x32xf32>
    %247 = math.tanh %246 : vector<8x32xf32>
    %248 = arith.mulf %243, %247 : vector<8x32xf32>
    %249 = vector.extract_strided_slice %18 {offsets = [40, 0], sizes = [8, 128], strides = [1, 1]} : vector<64x128xf32> to vector<8x128xf32>
    %cst_57 = arith.constant dense<0.000000e+00> : vector<8x128xf32>
    %250 = tpu.matmul %224, %1, %cst_57 {dimension_numbers = #tpu.dot_dimension_numbers<[1], [0], [0], [1], [0, 0, 1, 1], [], []>} : vector<8x32xf32>, vector<32x128xf32>, vector<8x128xf32> -> vector<8x128xf32>
    %251 = arith.addf %250, %249 : vector<8x128xf32>
    %252 = arith.negf %251 : vector<8x128xf32>
    %253 = math.exp %252 : vector<8x128xf32>
    %cst_58 = arith.constant 1.000000e+00 : f32
    %254 = vector.broadcast %cst_58 : f32 to vector<8x128xf32>
    %255 = arith.addf %254, %253 : vector<8x128xf32>
    %256 = arith.divf %254, %255 : vector<8x128xf32>
    %cst_59 = arith.constant 2.000000e+00 : f32
    %257 = vector.broadcast %cst_59 : f32 to vector<8x128xf32>
    %258 = arith.mulf %257, %256 : vector<8x128xf32>
    %cst_60 = arith.constant 1.000000e+00 : f32
    %259 = vector.broadcast %cst_60 : f32 to vector<8x128xf32>
    %260 = arith.subf %258, %259 : vector<8x128xf32>
    %261 = arith.select %13, %260, %256 : vector<8x128xi1>, vector<8x128xf32>
    %262 = vector.extract_strided_slice %261 {offsets = [0, 0], sizes = [8, 32], strides = [1, 1]} : vector<8x128xf32> to vector<8x32xf32>
    %263 = vector.extract_strided_slice %261 {offsets = [0, 32], sizes = [8, 32], strides = [1, 1]} : vector<8x128xf32> to vector<8x32xf32>
    %264 = vector.extract_strided_slice %261 {offsets = [0, 64], sizes = [8, 32], strides = [1, 1]} : vector<8x128xf32> to vector<8x32xf32>
    %265 = vector.extract_strided_slice %261 {offsets = [0, 96], sizes = [8, 32], strides = [1, 1]} : vector<8x128xf32> to vector<8x32xf32>
    %266 = arith.mulf %263, %222 : vector<8x32xf32>
    %267 = arith.mulf %262, %264 : vector<8x32xf32>
    %268 = arith.addf %266, %267 : vector<8x32xf32>
    %269 = math.tanh %268 : vector<8x32xf32>
    %270 = arith.mulf %265, %269 : vector<8x32xf32>
    %cst_61 = arith.constant dense<0.000000e+00> : vector<8x128xf32>
    %271 = tpu.matmul %270, %2, %cst_61 {dimension_numbers = #tpu.dot_dimension_numbers<[1], [0], [0], [1], [0, 0, 1, 1], [], []>} : vector<8x32xf32>, vector<32x128xf32>, vector<8x128xf32> -> vector<8x128xf32>
    %272 = vector.broadcast %5 : vector<1x128xf32> to vector<8x128xf32>
    %273 = arith.addf %271, %272 : vector<8x128xf32>
    %cst_62 = arith.constant dense<0.000000e+00> : vector<8x128xf32>
    %274 = tpu.matmul %248, %3, %cst_62 {dimension_numbers = #tpu.dot_dimension_numbers<[1], [0], [0], [1], [0, 0, 1, 1], [], []>} : vector<8x32xf32>, vector<32x128xf32>, vector<8x128xf32> -> vector<8x128xf32>
    %275 = arith.addf %274, %273 : vector<8x128xf32>
    %276 = arith.negf %275 : vector<8x128xf32>
    %277 = math.exp %276 : vector<8x128xf32>
    %cst_63 = arith.constant 1.000000e+00 : f32
    %278 = vector.broadcast %cst_63 : f32 to vector<8x128xf32>
    %279 = arith.addf %278, %277 : vector<8x128xf32>
    %280 = arith.divf %278, %279 : vector<8x128xf32>
    %cst_64 = arith.constant 2.000000e+00 : f32
    %281 = vector.broadcast %cst_64 : f32 to vector<8x128xf32>
    %282 = arith.mulf %281, %280 : vector<8x128xf32>
    %cst_65 = arith.constant 1.000000e+00 : f32
    %283 = vector.broadcast %cst_65 : f32 to vector<8x128xf32>
    %284 = arith.subf %282, %283 : vector<8x128xf32>
    %285 = arith.select %13, %284, %280 : vector<8x128xi1>, vector<8x128xf32>
    %286 = vector.extract_strided_slice %285 {offsets = [0, 0], sizes = [8, 32], strides = [1, 1]} : vector<8x128xf32> to vector<8x32xf32>
    %287 = vector.extract_strided_slice %285 {offsets = [0, 32], sizes = [8, 32], strides = [1, 1]} : vector<8x128xf32> to vector<8x32xf32>
    %288 = vector.extract_strided_slice %285 {offsets = [0, 64], sizes = [8, 32], strides = [1, 1]} : vector<8x128xf32> to vector<8x32xf32>
    %289 = vector.extract_strided_slice %285 {offsets = [0, 96], sizes = [8, 32], strides = [1, 1]} : vector<8x128xf32> to vector<8x32xf32>
    %290 = arith.mulf %287, %246 : vector<8x32xf32>
    %291 = arith.mulf %286, %288 : vector<8x32xf32>
    %292 = arith.addf %290, %291 : vector<8x32xf32>
    %293 = math.tanh %292 : vector<8x32xf32>
    %294 = arith.mulf %289, %293 : vector<8x32xf32>
    %295 = vector.extract_strided_slice %18 {offsets = [48, 0], sizes = [8, 128], strides = [1, 1]} : vector<64x128xf32> to vector<8x128xf32>
    %cst_66 = arith.constant dense<0.000000e+00> : vector<8x128xf32>
    %296 = tpu.matmul %270, %1, %cst_66 {dimension_numbers = #tpu.dot_dimension_numbers<[1], [0], [0], [1], [0, 0, 1, 1], [], []>} : vector<8x32xf32>, vector<32x128xf32>, vector<8x128xf32> -> vector<8x128xf32>
    %297 = arith.addf %296, %295 : vector<8x128xf32>
    %298 = arith.negf %297 : vector<8x128xf32>
    %299 = math.exp %298 : vector<8x128xf32>
    %cst_67 = arith.constant 1.000000e+00 : f32
    %300 = vector.broadcast %cst_67 : f32 to vector<8x128xf32>
    %301 = arith.addf %300, %299 : vector<8x128xf32>
    %302 = arith.divf %300, %301 : vector<8x128xf32>
    %cst_68 = arith.constant 2.000000e+00 : f32
    %303 = vector.broadcast %cst_68 : f32 to vector<8x128xf32>
    %304 = arith.mulf %303, %302 : vector<8x128xf32>
    %cst_69 = arith.constant 1.000000e+00 : f32
    %305 = vector.broadcast %cst_69 : f32 to vector<8x128xf32>
    %306 = arith.subf %304, %305 : vector<8x128xf32>
    %307 = arith.select %13, %306, %302 : vector<8x128xi1>, vector<8x128xf32>
    %308 = vector.extract_strided_slice %307 {offsets = [0, 0], sizes = [8, 32], strides = [1, 1]} : vector<8x128xf32> to vector<8x32xf32>
    %309 = vector.extract_strided_slice %307 {offsets = [0, 32], sizes = [8, 32], strides = [1, 1]} : vector<8x128xf32> to vector<8x32xf32>
    %310 = vector.extract_strided_slice %307 {offsets = [0, 64], sizes = [8, 32], strides = [1, 1]} : vector<8x128xf32> to vector<8x32xf32>
    %311 = vector.extract_strided_slice %307 {offsets = [0, 96], sizes = [8, 32], strides = [1, 1]} : vector<8x128xf32> to vector<8x32xf32>
    %312 = arith.mulf %309, %268 : vector<8x32xf32>
    %313 = arith.mulf %308, %310 : vector<8x32xf32>
    %314 = arith.addf %312, %313 : vector<8x32xf32>
    %315 = math.tanh %314 : vector<8x32xf32>
    %316 = arith.mulf %311, %315 : vector<8x32xf32>
    %cst_70 = arith.constant dense<0.000000e+00> : vector<8x128xf32>
    %317 = tpu.matmul %316, %2, %cst_70 {dimension_numbers = #tpu.dot_dimension_numbers<[1], [0], [0], [1], [0, 0, 1, 1], [], []>} : vector<8x32xf32>, vector<32x128xf32>, vector<8x128xf32> -> vector<8x128xf32>
    %318 = vector.broadcast %5 : vector<1x128xf32> to vector<8x128xf32>
    %319 = arith.addf %317, %318 : vector<8x128xf32>
    %cst_71 = arith.constant dense<0.000000e+00> : vector<8x128xf32>
    %320 = tpu.matmul %294, %3, %cst_71 {dimension_numbers = #tpu.dot_dimension_numbers<[1], [0], [0], [1], [0, 0, 1, 1], [], []>} : vector<8x32xf32>, vector<32x128xf32>, vector<8x128xf32> -> vector<8x128xf32>
    %321 = arith.addf %320, %319 : vector<8x128xf32>
    %322 = arith.negf %321 : vector<8x128xf32>
    %323 = math.exp %322 : vector<8x128xf32>
    %cst_72 = arith.constant 1.000000e+00 : f32
    %324 = vector.broadcast %cst_72 : f32 to vector<8x128xf32>
    %325 = arith.addf %324, %323 : vector<8x128xf32>
    %326 = arith.divf %324, %325 : vector<8x128xf32>
    %cst_73 = arith.constant 2.000000e+00 : f32
    %327 = vector.broadcast %cst_73 : f32 to vector<8x128xf32>
    %328 = arith.mulf %327, %326 : vector<8x128xf32>
    %cst_74 = arith.constant 1.000000e+00 : f32
    %329 = vector.broadcast %cst_74 : f32 to vector<8x128xf32>
    %330 = arith.subf %328, %329 : vector<8x128xf32>
    %331 = arith.select %13, %330, %326 : vector<8x128xi1>, vector<8x128xf32>
    %332 = vector.extract_strided_slice %331 {offsets = [0, 0], sizes = [8, 32], strides = [1, 1]} : vector<8x128xf32> to vector<8x32xf32>
    %333 = vector.extract_strided_slice %331 {offsets = [0, 32], sizes = [8, 32], strides = [1, 1]} : vector<8x128xf32> to vector<8x32xf32>
    %334 = vector.extract_strided_slice %331 {offsets = [0, 64], sizes = [8, 32], strides = [1, 1]} : vector<8x128xf32> to vector<8x32xf32>
    %335 = vector.extract_strided_slice %331 {offsets = [0, 96], sizes = [8, 32], strides = [1, 1]} : vector<8x128xf32> to vector<8x32xf32>
    %336 = arith.mulf %333, %292 : vector<8x32xf32>
    %337 = arith.mulf %332, %334 : vector<8x32xf32>
    %338 = arith.addf %336, %337 : vector<8x32xf32>
    %339 = math.tanh %338 : vector<8x32xf32>
    %340 = arith.mulf %335, %339 : vector<8x32xf32>
    %341 = vector.extract_strided_slice %18 {offsets = [56, 0], sizes = [8, 128], strides = [1, 1]} : vector<64x128xf32> to vector<8x128xf32>
    %cst_75 = arith.constant dense<0.000000e+00> : vector<8x128xf32>
    %342 = tpu.matmul %316, %1, %cst_75 {dimension_numbers = #tpu.dot_dimension_numbers<[1], [0], [0], [1], [0, 0, 1, 1], [], []>} : vector<8x32xf32>, vector<32x128xf32>, vector<8x128xf32> -> vector<8x128xf32>
    %343 = arith.addf %342, %341 : vector<8x128xf32>
    %344 = arith.negf %343 : vector<8x128xf32>
    %345 = math.exp %344 : vector<8x128xf32>
    %cst_76 = arith.constant 1.000000e+00 : f32
    %346 = vector.broadcast %cst_76 : f32 to vector<8x128xf32>
    %347 = arith.addf %346, %345 : vector<8x128xf32>
    %348 = arith.divf %346, %347 : vector<8x128xf32>
    %cst_77 = arith.constant 2.000000e+00 : f32
    %349 = vector.broadcast %cst_77 : f32 to vector<8x128xf32>
    %350 = arith.mulf %349, %348 : vector<8x128xf32>
    %cst_78 = arith.constant 1.000000e+00 : f32
    %351 = vector.broadcast %cst_78 : f32 to vector<8x128xf32>
    %352 = arith.subf %350, %351 : vector<8x128xf32>
    %353 = arith.select %13, %352, %348 : vector<8x128xi1>, vector<8x128xf32>
    %354 = vector.extract_strided_slice %353 {offsets = [0, 0], sizes = [8, 32], strides = [1, 1]} : vector<8x128xf32> to vector<8x32xf32>
    %355 = vector.extract_strided_slice %353 {offsets = [0, 32], sizes = [8, 32], strides = [1, 1]} : vector<8x128xf32> to vector<8x32xf32>
    %356 = vector.extract_strided_slice %353 {offsets = [0, 64], sizes = [8, 32], strides = [1, 1]} : vector<8x128xf32> to vector<8x32xf32>
    %357 = vector.extract_strided_slice %353 {offsets = [0, 96], sizes = [8, 32], strides = [1, 1]} : vector<8x128xf32> to vector<8x32xf32>
    %358 = arith.mulf %355, %314 : vector<8x32xf32>
    %359 = arith.mulf %354, %356 : vector<8x32xf32>
    %360 = arith.addf %358, %359 : vector<8x32xf32>
    %361 = math.tanh %360 : vector<8x32xf32>
    %362 = arith.mulf %357, %361 : vector<8x32xf32>
    %cst_79 = arith.constant dense<0.000000e+00> : vector<8x128xf32>
    %363 = tpu.matmul %362, %2, %cst_79 {dimension_numbers = #tpu.dot_dimension_numbers<[1], [0], [0], [1], [0, 0, 1, 1], [], []>} : vector<8x32xf32>, vector<32x128xf32>, vector<8x128xf32> -> vector<8x128xf32>
    %364 = vector.broadcast %5 : vector<1x128xf32> to vector<8x128xf32>
    %365 = arith.addf %363, %364 : vector<8x128xf32>
    %cst_80 = arith.constant dense<0.000000e+00> : vector<8x128xf32>
    %366 = tpu.matmul %340, %3, %cst_80 {dimension_numbers = #tpu.dot_dimension_numbers<[1], [0], [0], [1], [0, 0, 1, 1], [], []>} : vector<8x32xf32>, vector<32x128xf32>, vector<8x128xf32> -> vector<8x128xf32>
    %367 = arith.addf %366, %365 : vector<8x128xf32>
    %368 = arith.negf %367 : vector<8x128xf32>
    %369 = math.exp %368 : vector<8x128xf32>
    %cst_81 = arith.constant 1.000000e+00 : f32
    %370 = vector.broadcast %cst_81 : f32 to vector<8x128xf32>
    %371 = arith.addf %370, %369 : vector<8x128xf32>
    %372 = arith.divf %370, %371 : vector<8x128xf32>
    %cst_82 = arith.constant 2.000000e+00 : f32
    %373 = vector.broadcast %cst_82 : f32 to vector<8x128xf32>
    %374 = arith.mulf %373, %372 : vector<8x128xf32>
    %cst_83 = arith.constant 1.000000e+00 : f32
    %375 = vector.broadcast %cst_83 : f32 to vector<8x128xf32>
    %376 = arith.subf %374, %375 : vector<8x128xf32>
    %377 = arith.select %13, %376, %372 : vector<8x128xi1>, vector<8x128xf32>
    %378 = vector.extract_strided_slice %377 {offsets = [0, 0], sizes = [8, 32], strides = [1, 1]} : vector<8x128xf32> to vector<8x32xf32>
    %379 = vector.extract_strided_slice %377 {offsets = [0, 32], sizes = [8, 32], strides = [1, 1]} : vector<8x128xf32> to vector<8x32xf32>
    %380 = vector.extract_strided_slice %377 {offsets = [0, 64], sizes = [8, 32], strides = [1, 1]} : vector<8x128xf32> to vector<8x32xf32>
    %381 = vector.extract_strided_slice %377 {offsets = [0, 96], sizes = [8, 32], strides = [1, 1]} : vector<8x128xf32> to vector<8x32xf32>
    %382 = arith.mulf %379, %338 : vector<8x32xf32>
    %383 = arith.mulf %378, %380 : vector<8x32xf32>
    %384 = arith.addf %382, %383 : vector<8x32xf32>
    %385 = math.tanh %384 : vector<8x32xf32>
    %386 = arith.mulf %381, %385 : vector<8x32xf32>
    %387 = vector.broadcast %6 : vector<1x32xf32> to vector<8x32xf32>
    %388 = arith.mulf %386, %387 : vector<8x32xf32>
    %cst_84 = arith.constant dense<0.000000e+00> : vector<8xf32>
    %389 = vector.multi_reduction <add>, %388, %cst_84 [1] : vector<8x32xf32> to vector<8xf32>
    %390 = vector.shape_cast %389 : vector<8xf32> to vector<8x1xf32>
    %391 = vector.broadcast %7 : vector<1x1xf32> to vector<8x1xf32>
    %392 = arith.addf %390, %391 : vector<8x1xf32>
    %c0_85 = arith.constant 0 : index
    %c0_86 = arith.constant 0 : index
    %393 = vector.load %arg3[%c0_85, %c0_86] : memref<8x1xf32, #tpu.memory_space<vmem>>, vector<8x1xf32>
    tpu.vector_store %arg3[%c0_85, %c0_86], %392 {strides = array<i32>} : memref<8x1xf32, #tpu.memory_space<vmem>>, vector<8x1xf32>,
    return
  }
}

</mosaic_0001>

<llo_original>
// kernel: tpu_custom_call.1
$region0: #{tpu_custom_call.1}
  #allocation0 [shape = 'u32[]', space=smem, size = 0x4, offset = 0x4, fixed_abs, tag = 'smem constant byte address 0x4 - core index']
  #allocation1 [shape = 'u32[144,128]{1,0:T(1,128)}', space=vmem, size = 0x12000, scoped, tag = 'internal scratch']
  %s0 = inlined_call_operand.vmem [shape: f32[64,8], index: 0, kind: input, shape index: {}]
  %s1 = inlined_call_operand.hbm [shape: f32[104,128], index: 1, kind: input, shape index: {}]
  %s2 = inlined_call_operand.vmem [shape: f32[8,128], index: 2, kind: input, shape index: {}]
  %s3 = inlined_call_operand.vmem [shape: f32[8,1], index: 3, kind: output, shape index: {}]
  %s4 = sld [smem:[#allocation0]]
  $region26: #{tpu_custom_call.1} parent=0
    _
  %s6 = ssub.s32 1, %s4
  %s7 = scalar_select 0, %s6, %s4
  $region1: #{tpu_custom_call.1} parent=0
    #allocation2 [shape = 'u8[53248]{0}', space=vmem, size = 0xd000, scoped, tag = 'input window, operand 1, single buffered']
    #allocation3 [shape = 's32[1]{0}', space=sflag, size = 0x4, scoped, tag = 'scoped memory for tpu_custom_call.1']
    %8 = vsyncpa [#allocation3], 0
    // Predicated region
    $region2: #{tpu_custom_call.1} parent=1 // pred_check
      _
    $region3: #{tpu_custom_call.1} parent=1 // pred_check_branch
      %10 = sbr.rel (0) target = $region5
    $region4: #{tpu_custom_call.1} parent=1 // pred_region
      _
    $region5: #{tpu_custom_call.1} parent=1 // pred_fallthru
      _
    // Predicated region
    $region6: #{tpu_custom_call.1} parent=1 // pred_check
      _
    $region7: #{tpu_custom_call.1} parent=1 // pred_check_branch
      %12 = sbr.rel (0) target = $region9
    $region8: #{tpu_custom_call.1} parent=1 // pred_region
      %s14 = ssub.s32 1664, 1664
      %15 = vsyncadd [#allocation3], %s14
      %s16 = sshll.u32 [#allocation2], 4
      %s17 = int_to_ptr.vmem [resolvable:$true] %s16
      %22 = dma.hbm_to_vmem [thread:$0]  %s1, 1664, %s17, [#allocation3], 128, 128, 8
    $region9: #{tpu_custom_call.1} parent=1 // pred_fallthru
      _
    // Predicated region
    $region10: #{tpu_custom_call.1} parent=1 // pred_check
      _
    $region11: #{tpu_custom_call.1} parent=1 // pred_check_branch
      %24 = sbr.rel (0) target = $region13
    $region12: #{tpu_custom_call.1} parent=1 // pred_region
      _
    $region13: #{tpu_custom_call.1} parent=1 // pred_fallthru
      _
    // Predicated region
    $region14: #{tpu_custom_call.1} parent=1 // pred_check
      _
    $region15: #{tpu_custom_call.1} parent=1 // pred_check_branch
      %26 = sbr.rel (0) target = $region17
    $region16: #{tpu_custom_call.1} parent=1 // pred_region
      %27 = dma.done [#allocation3], 1664
    $region17: #{tpu_custom_call.1} parent=1 // pred_fallthru
      _
    %v28 = vld [vmem:[#allocation2] sm:$0xff]
    %v29 = vld [vmem:[#allocation2 + $0x8] sm:$0xff]
    %v30 = vld [vmem:[#allocation2 + $0x10] sm:$0xff]
    %v31 = vld [vmem:[#allocation2 + $0x18] sm:$0xff]
    %v32 = vld [vmem:[#allocation2 + $0x20] sm:$0xff]
    %v33 = vld [vmem:[#allocation2 + $0x28] sm:$0xff]
    %v34 = vld [vmem:[#allocation2 + $0x30] sm:$0xff]
    %v35 = vld [vmem:[#allocation2 + $0x38] sm:$0xff]
    %v36 = vld [vmem:[#allocation2 + $0x40] sm:$0xff]
    %v37 = vld [vmem:[#allocation2 + $0x48] sm:$0xff]
    %v38 = vld [vmem:[#allocation2 + $0x50] sm:$0xff]
    %v39 = vld [vmem:[#allocation2 + $0x58] sm:$0xff]
    %v40 = vld [vmem:[#allocation2 + $0x60] sm:$0xff]
    %v41 = vld [vmem:[%s2] sm:$0x1]
    %v42 = vld [vmem:[%s2 + $0x1] sm:$0x1]
    %v43 = vld [vmem:[%s2 + $0x2] sm:$0x1]
    %v44 = vld [vmem:[%s2 + $0x3] sm:$0x1]
    %v45 = vlaneseq
    %v46 = vand.u32 %v45, 127
    %vm47 = vcmp.ge.s32.totalorder %v46, 64
    %vm48 = vcmp.lt.s32.totalorder %v46, 96
    %vm49 = vmand %vm47, %vm48
    %v50 = vld [vmem:[%s0] sm:$0xff]
    %v51 = vld [vmem:[%s0 + $0x8] sm:$0xff]
    %v52 = vld [vmem:[%s0 + $0x10] sm:$0xff]
    %v53 = vld [vmem:[%s0 + $0x18] sm:$0xff]
    %v54 = vld [vmem:[%s0 + $0x20] sm:$0xff]
    %v55 = vld [vmem:[%s0 + $0x28] sm:$0xff]
    %v56 = vld [vmem:[%s0 + $0x30] sm:$0xff]
    %v57 = vld [vmem:[%s0 + $0x38] sm:$0xff]
    %v58 = vlaneseq
    %v59 = vshrl.u32 %v58, 7
    %v60 = vsub.s32 0, %v59
    %v61 = vrot.slane %v41, %v60
    %vm62 = vcmask 64512
    %v64 = vsel %vm62, %v50, 0
    %v67 = vsel %vm62, %v51, 0
    %v70 = vsel %vm62, %v52, 0
    %v73 = vsel %vm62, %v53, 0
    %v76 = vsel %vm62, %v54, 0
    %v79 = vsel %vm62, %v55, 0
    %v82 = vsel %vm62, %v56, 0
    %v85 = vsel %vm62, %v57, 0
    %87 = vmatprep.subr.mxu0 0.0
    %88 = vmatpush1.msra.mxu0 0.0
    %89 = vmatprep.subr.mxu0 0.0
    %90 = vmatpush1.msra.mxu0 0.0
    %91 = vmatprep.subr.mxu0 0.0
    %92 = vmatpush1.msra.mxu0 0.0
    %93 = vmatprep.subr.mxu0 0.0
    %94 = vmatpush1.msra.mxu0 0.0
    %95 = vmatprep.subr.mxu0 0.0
    %96 = vmatpush1.msra.mxu0 0.0
    %97 = vmatprep.subr.mxu0 0.0
    %98 = vmatpush1.msra.mxu0 0.0
    %99 = vmatprep.subr.mxu0 0.0
    %100 = vmatpush1.msra.mxu0 0.0
    %101 = vmatprep.subr.mxu0 0.0
    %102 = vmatpush1.msra.mxu0 0.0
    %103 = vmatprep.subr.mxu0 0.0
    %104 = vmatpush1.msra.mxu0 0.0
    %105 = vmatprep.subr.mxu0 0.0
    %106 = vmatpush1.msra.mxu0 0.0
    %107 = vmatprep.subr.mxu0 0.0
    %108 = vmatpush1.msra.mxu0 0.0
    %109 = vmatprep.subr.mxu0 0.0
    %110 = vmatpush1.msra.mxu0 0.0
    %111 = vmatprep.subr.mxu0 0.0
    %112 = vmatpush1.msra.mxu0 0.0
    %113 = vmatprep.subr.mxu0 0.0
    %114 = vmatpush1.msra.mxu0 0.0
    %115 = vmatprep.subr.mxu0 0.0
    %116 = vmatpush1.msra.mxu0 0.0
    %117 = vmatprep.subr.mxu0 0.0
    %118 = vmatpush1.msra.mxu0 %v28
    %119 = vmatprep.subr.mxu0 0.0
    %120 = vmatpush2.msra.mxu0 0.0
    %121 = vmatprep.subr.mxu0 0.0
    %122 = vmatpush2.msra.mxu0 0.0
    %123 = vmatprep.subr.mxu0 0.0
    %124 = vmatpush2.msra.mxu0 0.0
    %125 = vmatprep.subr.mxu0 0.0
    %126 = vmatpush2.msra.mxu0 0.0
    %127 = vmatprep.subr.mxu0 0.0
    %128 = vmatpush2.msra.mxu0 0.0
    %129 = vmatprep.subr.mxu0 0.0
    %130 = vmatpush2.msra.mxu0 0.0
    %131 = vmatprep.subr.mxu0 0.0
    %132 = vmatpush2.msra.mxu0 0.0
    %133 = vmatprep.subr.mxu0 0.0
    %134 = vmatpush2.msra.mxu0 0.0
    %135 = vmatprep.subr.mxu0 0.0
    %136 = vmatpush2.msra.mxu0 0.0
    %137 = vmatprep.subr.mxu0 0.0
    %138 = vmatpush2.msra.mxu0 0.0
    %139 = vmatprep.subr.mxu0 0.0
    %140 = vmatpush2.msra.mxu0 0.0
    %141 = vmatprep.subr.mxu0 0.0
    %142 = vmatpush2.msra.mxu0 0.0
    %143 = vmatprep.subr.mxu0 0.0
    %144 = vmatpush2.msra.mxu0 0.0
    %145 = vmatprep.subr.mxu0 0.0
    %146 = vmatpush2.msra.mxu0 0.0
    %147 = vmatprep.subr.mxu0 0.0
    %148 = vmatpush2.msra.mxu0 0.0
    %149 = vmatprep.subr.mxu0 0.0
    %150 = vmatpush2.msra.mxu0 0.0
    %151 = vmatprep.mubr.f32.mxu0 0.0
    %152 = vmatmul.mubr.f32.gmra.mxu0 %v64
    %v153 = vpop.f32.mrf.mxu0
    %v154 = vadd.f32 %v61, %v153
    %v155 = vpop.f32.mrf.mxu0
    %156 = vmatprep.mubr.f32.mxu0 0.0
    %157 = vmatmul.mubr.f32.gmra.mxu0 %v67
    %v158 = vpop.f32.mrf.mxu0
    %v159 = vadd.f32 %v61, %v158
    %v160 = vpop.f32.mrf.mxu0
    %161 = vmatprep.mubr.f32.mxu0 0.0
    %162 = vmatmul.mubr.f32.gmra.mxu0 %v70
    %v163 = vpop.f32.mrf.mxu0
    %v164 = vadd.f32 %v61, %v163
    %v165 = vpop.f32.mrf.mxu0
    %166 = vmatprep.mubr.f32.mxu0 0.0
    %167 = vmatmul.mubr.f32.gmra.mxu0 %v73
    %v168 = vpop.f32.mrf.mxu0
    %v169 = vadd.f32 %v61, %v168
    %v170 = vpop.f32.mrf.mxu0
    %171 = vmatprep.mubr.f32.mxu0 0.0
    %172 = vmatmul.mubr.f32.gmra.mxu0 %v76
    %v173 = vpop.f32.mrf.mxu0
    %v174 = vadd.f32 %v61, %v173
    %v175 = vpop.f32.mrf.mxu0
    %176 = vmatprep.mubr.f32.mxu0 0.0
    %177 = vmatmul.mubr.f32.gmra.mxu0 %v79
    %v178 = vpop.f32.mrf.mxu0
    %v179 = vadd.f32 %v61, %v178
    %v180 = vpop.f32.mrf.mxu0
    %181 = vmatprep.mubr.f32.mxu0 0.0
    %182 = vmatmul.mubr.f32.gmra.mxu0 %v82
    %v183 = vpop.f32.mrf.mxu0
    %v184 = vadd.f32 %v61, %v183
    %v185 = vpop.f32.mrf.mxu0
    %186 = vmatprep.mubr.f32.mxu0 0.0
    %187 = vmatmul.mubr.f32.gmra.mxu0 %v85
    %v188 = vpop.f32.mrf.mxu0
    %v189 = vadd.f32 %v61, %v188
    %v190 = vpop.f32.mrf.mxu0
    %191 = vdwg.mxu0
    %vm192 = vcmask 261120
    %v194 = vsel %vm192, 0.0, 0
    %196 = vmatprep.subr.mxu0 0.0
    %197 = vmatpush1.msra.mxu0 0.0
    %198 = vmatprep.subr.mxu0 0.0
    %199 = vmatpush1.msra.mxu0 0.0
    %200 = vmatprep.subr.mxu0 0.0
    %201 = vmatpush1.msra.mxu0 0.0
    %202 = vmatprep.subr.mxu0 0.0
    %203 = vmatpush1.msra.mxu0 0.0
    %204 = vmatprep.subr.mxu0 0.0
    %205 = vmatpush1.msra.mxu0 0.0
    %206 = vmatprep.subr.mxu0 0.0
    %207 = vmatpush1.msra.mxu0 0.0
    %208 = vmatprep.subr.mxu0 0.0
    %209 = vmatpush1.msra.mxu0 0.0
    %210 = vmatprep.subr.mxu0 0.0
    %211 = vmatpush1.msra.mxu0 0.0
    %212 = vmatprep.subr.mxu0 0.0
    %213 = vmatpush1.msra.mxu0 0.0
    %214 = vmatprep.subr.mxu0 0.0
    %215 = vmatpush1.msra.mxu0 0.0
    %216 = vmatprep.subr.mxu0 0.0
    %217 = vmatpush1.msra.mxu0 0.0
    %218 = vmatprep.subr.mxu0 0.0
    %219 = vmatpush1.msra.mxu0 0.0
    %220 = vmatprep.subr.mxu0 0.0
    %221 = vmatpush1.msra.mxu0 %v32
    %222 = vmatprep.subr.mxu0 0.0
    %223 = vmatpush1.msra.mxu0 %v31
    %224 = vmatprep.subr.mxu0 0.0
    %225 = vmatpush1.msra.mxu0 %v30
    %226 = vmatprep.subr.mxu0 0.0
    %227 = vmatpush1.msra.mxu0 %v29
    %228 = vmatprep.subr.mxu0 0.0
    %229 = vmatpush2.msra.mxu0 0.0
    %230 = vmatprep.subr.mxu0 0.0
    %231 = vmatpush2.msra.mxu0 0.0
    %232 = vmatprep.subr.mxu0 0.0
    %233 = vmatpush2.msra.mxu0 0.0
    %234 = vmatprep.subr.mxu0 0.0
    %235 = vmatpush2.msra.mxu0 0.0
    %236 = vmatprep.subr.mxu0 0.0
    %237 = vmatpush2.msra.mxu0 0.0
    %238 = vmatprep.subr.mxu0 0.0
    %239 = vmatpush2.msra.mxu0 0.0
    %240 = vmatprep.subr.mxu0 0.0
    %241 = vmatpush2.msra.mxu0 0.0
    %242 = vmatprep.subr.mxu0 0.0
    %243 = vmatpush2.msra.mxu0 0.0
    %244 = vmatprep.subr.mxu0 0.0
    %245 = vmatpush2.msra.mxu0 0.0
    %246 = vmatprep.subr.mxu0 0.0
    %247 = vmatpush2.msra.mxu0 0.0
    %248 = vmatprep.subr.mxu0 0.0
    %249 = vmatpush2.msra.mxu0 0.0
    %250 = vmatprep.subr.mxu0 0.0
    %251 = vmatpush2.msra.mxu0 0.0
    %252 = vmatprep.subr.mxu0 0.0
    %253 = vmatpush2.msra.mxu0 0.0
    %254 = vmatprep.subr.mxu0 0.0
    %255 = vmatpush2.msra.mxu0 0.0
    %256 = vmatprep.subr.mxu0 0.0
    %257 = vmatpush2.msra.mxu0 0.0
    %258 = vmatprep.subr.mxu0 0.0
    %259 = vmatpush2.msra.mxu0 0.0
    %260 = vmatprep.mubr.f32.mxu0 0.0
    %261 = vmatmul.mubr.f32.gmra.mxu0 %v194
    %v262 = vpop.f32.mrf.mxu0
    %v263 = vadd.f32 %v154, %v262
    %v264 = vpop.f32.mrf.mxu0
    %265 = vdwg.mxu0
    %v266 = vxor.u32 %v263, 2147483648
    %v267 = vmul.f32 %v266, 1.442695
    %v268 = vpow.pop %v267
    %v269 = vadd.f32 %v268, 1.0
    %v270 = vrcp.pop %v269
    %v271 = vmul.f32 1.0, %v270
    %v272 = vmul.f32 %v271, 2.0
    %v273 = vsub.f32 %v272, 1.0
    %v274 = vsel %vm49, %v273, %v271
    %v275 = vmul.f32 %v274, 0.0
    %277 = vrot.lane.b32.xlu0 %v274, 64
    %v278 = vpop.permute.xlu0 %277
    %v280 = vmul.f32 %v274, %v278
    %282 = vrot.lane.b32.xlu0 %v280, 32
    %v283 = vpop.permute.xlu0 %282
    %v285 = vadd.f32 %v275, %v283
    %v286 = vtanh.pop %v285
    %288 = vrot.lane.b32.xlu0 %v286, 64
    %v289 = vpop.permute.xlu0 %288
    %v291 = vmul.f32 %v274, %v289
    %v292 = vlaneseq
    %v293 = vshrl.u32 %v292, 7
    %v294 = vsub.s32 0, %v293
    %v295 = vrot.slane %v42, %v294
    %297 = vrot.lane.b32.xlu0 %v291, 32
    %v298 = vpop.permute.xlu0 %297
    %v299 = vsel %vm192, %v298, 0
    %301 = vmatprep.subr.mxu0 0.0
    %302 = vmatpush1.msra.mxu0 0.0
    %303 = vmatprep.subr.mxu0 0.0
    %304 = vmatpush1.msra.mxu0 0.0
    %305 = vmatprep.subr.mxu0 0.0
    %306 = vmatpush1.msra.mxu0 0.0
    %307 = vmatprep.subr.mxu0 0.0
    %308 = vmatpush1.msra.mxu0 0.0
    %309 = vmatprep.subr.mxu0 0.0
    %310 = vmatpush1.msra.mxu0 0.0
    %311 = vmatprep.subr.mxu0 0.0
    %312 = vmatpush1.msra.mxu0 0.0
    %313 = vmatprep.subr.mxu0 0.0
    %314 = vmatpush1.msra.mxu0 0.0
    %315 = vmatprep.subr.mxu0 0.0
    %316 = vmatpush1.msra.mxu0 0.0
    %317 = vmatprep.subr.mxu0 0.0
    %318 = vmatpush1.msra.mxu0 0.0
    %319 = vmatprep.subr.mxu0 0.0
    %320 = vmatpush1.msra.mxu0 0.0
    %321 = vmatprep.subr.mxu0 0.0
    %322 = vmatpush1.msra.mxu0 0.0
    %323 = vmatprep.subr.mxu0 0.0
    %324 = vmatpush1.msra.mxu0 0.0
    %325 = vmatprep.subr.mxu0 0.0
    %326 = vmatpush1.msra.mxu0 %v36
    %327 = vmatprep.subr.mxu0 0.0
    %328 = vmatpush1.msra.mxu0 %v35
    %329 = vmatprep.subr.mxu0 0.0
    %330 = vmatpush1.msra.mxu0 %v34
    %331 = vmatprep.subr.mxu0 0.0
    %332 = vmatpush1.msra.mxu0 %v33
    %333 = vmatprep.subr.mxu0 0.0
    %334 = vmatpush2.msra.mxu0 0.0
    %335 = vmatprep.subr.mxu0 0.0
    %336 = vmatpush2.msra.mxu0 0.0
    %337 = vmatprep.subr.mxu0 0.0
    %338 = vmatpush2.msra.mxu0 0.0
    %339 = vmatprep.subr.mxu0 0.0
    %340 = vmatpush2.msra.mxu0 0.0
    %341 = vmatprep.subr.mxu0 0.0
    %342 = vmatpush2.msra.mxu0 0.0
    %343 = vmatprep.subr.mxu0 0.0
    %344 = vmatpush2.msra.mxu0 0.0
    %345 = vmatprep.subr.mxu0 0.0
    %346 = vmatpush2.msra.mxu0 0.0
    %347 = vmatprep.subr.mxu0 0.0
    %348 = vmatpush2.msra.mxu0 0.0
    %349 = vmatprep.subr.mxu0 0.0
    %350 = vmatpush2.msra.mxu0 0.0
    %351 = vmatprep.subr.mxu0 0.0
    %352 = vmatpush2.msra.mxu0 0.0
    %353 = vmatprep.subr.mxu0 0.0
    %354 = vmatpush2.msra.mxu0 0.0
    %355 = vmatprep.subr.mxu0 0.0
    %356 = vmatpush2.msra.mxu0 0.0
    %357 = vmatprep.subr.mxu0 0.0
    %358 = vmatpush2.msra.mxu0 0.0
    %359 = vmatprep.subr.mxu0 0.0
    %360 = vmatpush2.msra.mxu0 0.0
    %361 = vmatprep.subr.mxu0 0.0
    %362 = vmatpush2.msra.mxu0 0.0
    %363 = vmatprep.subr.mxu0 0.0
    %364 = vmatpush2.msra.mxu0 0.0
    %365 = vmatprep.mubr.f32.mxu0 0.0
    %366 = vmatmul.mubr.f32.gmra.mxu0 %v299
    %v367 = vpop.f32.mrf.mxu0
    %v368 = vadd.f32 %v295, %v367
    %v369 = vpop.f32.mrf.mxu0
    %370 = vdwg.mxu0
    %371 = vmatprep.subr.mxu0 0.0
    %372 = vmatpush1.msra.mxu0 0.0
    %373 = vmatprep.subr.mxu0 0.0
    %374 = vmatpush1.msra.mxu0 0.0
    %375 = vmatprep.subr.mxu0 0.0
    %376 = vmatpush1.msra.mxu0 0.0
    %377 = vmatprep.subr.mxu0 0.0
    %378 = vmatpush1.msra.mxu0 0.0
    %379 = vmatprep.subr.mxu0 0.0
    %380 = vmatpush1.msra.mxu0 0.0
    %381 = vmatprep.subr.mxu0 0.0
    %382 = vmatpush1.msra.mxu0 0.0
    %383 = vmatprep.subr.mxu0 0.0
    %384 = vmatpush1.msra.mxu0 0.0
    %385 = vmatprep.subr.mxu0 0.0
    %386 = vmatpush1.msra.mxu0 0.0
    %387 = vmatprep.subr.mxu0 0.0
    %388 = vmatpush1.msra.mxu0 0.0
    %389 = vmatprep.subr.mxu0 0.0
    %390 = vmatpush1.msra.mxu0 0.0
    %391 = vmatprep.subr.mxu0 0.0
    %392 = vmatpush1.msra.mxu0 0.0
    %393 = vmatprep.subr.mxu0 0.0
    %394 = vmatpush1.msra.mxu0 0.0
    %395 = vmatprep.subr.mxu0 0.0
    %396 = vmatpush1.msra.mxu0 %v40
    %397 = vmatprep.subr.mxu0 0.0
    %398 = vmatpush1.msra.mxu0 %v39
    %399 = vmatprep.subr.mxu0 0.0
    %400 = vmatpush1.msra.mxu0 %v38
    %401 = vmatprep.subr.mxu0 0.0
    %402 = vmatpush1.msra.mxu0 %v37
    %403 = vmatprep.subr.mxu0 0.0
    %404 = vmatpush2.msra.mxu0 0.0
    %405 = vmatprep.subr.mxu0 0.0
    %406 = vmatpush2.msra.mxu0 0.0
    %407 = vmatprep.subr.mxu0 0.0
    %408 = vmatpush2.msra.mxu0 0.0
    %409 = vmatprep.subr.mxu0 0.0
    %410 = vmatpush2.msra.mxu0 0.0
    %411 = vmatprep.subr.mxu0 0.0
    %412 = vmatpush2.msra.mxu0 0.0
    %413 = vmatprep.subr.mxu0 0.0
    %414 = vmatpush2.msra.mxu0 0.0
    %415 = vmatprep.subr.mxu0 0.0
    %416 = vmatpush2.msra.mxu0 0.0
    %417 = vmatprep.subr.mxu0 0.0
    %418 = vmatpush2.msra.mxu0 0.0
    %419 = vmatprep.subr.mxu0 0.0
    %420 = vmatpush2.msra.mxu0 0.0
    %421 = vmatprep.subr.mxu0 0.0
    %422 = vmatpush2.msra.mxu0 0.0
    %423 = vmatprep.subr.mxu0 0.0
    %424 = vmatpush2.msra.mxu0 0.0
    %425 = vmatprep.subr.mxu0 0.0
    %426 = vmatpush2.msra.mxu0 0.0
    %427 = vmatprep.subr.mxu0 0.0
    %428 = vmatpush2.msra.mxu0 0.0
    %429 = vmatprep.subr.mxu0 0.0
    %430 = vmatpush2.msra.mxu0 0.0
    %431 = vmatprep.subr.mxu0 0.0
    %432 = vmatpush2.msra.mxu0 0.0
    %433 = vmatprep.subr.mxu0 0.0
    %434 = vmatpush2.msra.mxu0 0.0
    %435 = vmatprep.mubr.f32.mxu0 0.0
    %436 = vmatmul.mubr.f32.gmra.mxu0 %v194
    %v437 = vpop.f32.mrf.mxu0
    %v438 = vadd.f32 %v368, %v437
    %v439 = vpop.f32.mrf.mxu0
    %440 = vdwg.mxu0
    %v441 = vxor.u32 %v438, 2147483648
    %v442 = vmul.f32 %v441, 1.442695
    %v443 = vpow.pop %v442
    %v444 = vadd.f32 %v443, 1.0
    %v445 = vrcp.pop %v444
    %v446 = vmul.f32 1.0, %v445
    %v447 = vmul.f32 %v446, 2.0
    %v448 = vsub.f32 %v447, 1.0
    %v449 = vsel %vm49, %v448, %v446
    %v450 = vmul.f32 %v449, 0.0
    %452 = vrot.lane.b32.xlu0 %v449, 64
    %v453 = vpop.permute.xlu0 %452
    %v455 = vmul.f32 %v449, %v453
    %457 = vrot.lane.b32.xlu0 %v455, 32
    %v458 = vpop.permute.xlu0 %457
    %v460 = vadd.f32 %v450, %v458
    %v461 = vtanh.pop %v460
    %463 = vrot.lane.b32.xlu0 %v461, 64
    %v464 = vpop.permute.xlu0 %463
    %v466 = vmul.f32 %v449, %v464
    %467 = vmatprep.subr.mxu0 0.0
    %468 = vmatpush1.msra.mxu0 0.0
    %469 = vmatprep.subr.mxu0 0.0
    %470 = vmatpush1.msra.mxu0 0.0
    %471 = vmatprep.subr.mxu0 0.0
    %472 = vmatpush1.msra.mxu0 0.0
    %473 = vmatprep.subr.mxu0 0.0
    %474 = vmatpush1.msra.mxu0 0.0
    %475 = vmatprep.subr.mxu0 0.0
    %476 = vmatpush1.msra.mxu0 0.0
    %477 = vmatprep.subr.mxu0 0.0
    %478 = vmatpush1.msra.mxu0 0.0
    %479 = vmatprep.subr.mxu0 0.0
    %480 = vmatpush1.msra.mxu0 0.0
    %481 = vmatprep.subr.mxu0 0.0
    %482 = vmatpush1.msra.mxu0 0.0
    %483 = vmatprep.subr.mxu0 0.0
    %484 = vmatpush1.msra.mxu0 0.0
    %485 = vmatprep.subr.mxu0 0.0
    %486 = vmatpush1.msra.mxu0 0.0
    %487 = vmatprep.subr.mxu0 0.0
    %488 = vmatpush1.msra.mxu0 0.0
    %489 = vmatprep.subr.mxu0 0.0
    %490 = vmatpush1.msra.mxu0 0.0
    %491 = vmatprep.subr.mxu0 0.0
    %492 = vmatpush1.msra.mxu0 %v32
    %493 = vmatprep.subr.mxu0 0.0
    %494 = vmatpush1.msra.mxu0 %v31
    %495 = vmatprep.subr.mxu0 0.0
    %496 = vmatpush1.msra.mxu0 %v30
    %497 = vmatprep.subr.mxu0 0.0
    %498 = vmatpush1.msra.mxu0 %v29
    %499 = vmatprep.subr.mxu0 0.0
    %500 = vmatpush2.msra.mxu0 0.0
    %501 = vmatprep.subr.mxu0 0.0
    %502 = vmatpush2.msra.mxu0 0.0
    %503 = vmatprep.subr.mxu0 0.0
    %504 = vmatpush2.msra.mxu0 0.0
    %505 = vmatprep.subr.mxu0 0.0
    %506 = vmatpush2.msra.mxu0 0.0
    %507 = vmatprep.subr.mxu0 0.0
    %508 = vmatpush2.msra.mxu0 0.0
    %509 = vmatprep.subr.mxu0 0.0
    %510 = vmatpush2.msra.mxu0 0.0
    %511 = vmatprep.subr.mxu0 0.0
    %512 = vmatpush2.msra.mxu0 0.0
    %513 = vmatprep.subr.mxu0 0.0
    %514 = vmatpush2.msra.mxu0 0.0
    %515 = vmatprep.subr.mxu0 0.0
    %516 = vmatpush2.msra.mxu0 0.0
    %517 = vmatprep.subr.mxu0 0.0
    %518 = vmatpush2.msra.mxu0 0.0
    %519 = vmatprep.subr.mxu0 0.0
    %520 = vmatpush2.msra.mxu0 0.0
    %521 = vmatprep.subr.mxu0 0.0
    %522 = vmatpush2.msra.mxu0 0.0
    %523 = vmatprep.subr.mxu0 0.0
    %524 = vmatpush2.msra.mxu0 0.0
    %525 = vmatprep.subr.mxu0 0.0
    %526 = vmatpush2.msra.mxu0 0.0
    %527 = vmatprep.subr.mxu0 0.0
    %528 = vmatpush2.msra.mxu0 0.0
    %529 = vmatprep.subr.mxu0 0.0
    %530 = vmatpush2.msra.mxu0 0.0
    %531 = vmatprep.mubr.f32.mxu0 0.0
    %532 = vmatmul.mubr.f32.gmra.mxu0 %v299
    %v533 = vpop.f32.mrf.mxu0
    %v534 = vadd.f32 %v159, %v533
    %v535 = vpop.f32.mrf.mxu0
    %536 = vdwg.mxu0
    %v537 = vxor.u32 %v534, 2147483648
    %v538 = vmul.f32 %v537, 1.442695
    %v539 = vpow.pop %v538
    %v540 = vadd.f32 %v539, 1.0
    %v541 = vrcp.pop %v540
    %v542 = vmul.f32 1.0, %v541
    %v543 = vmul.f32 %v542, 2.0
    %v544 = vsub.f32 %v543, 1.0
    %v545 = vsel %vm49, %v544, %v542
    %v546 = vmul.f32 %v545, %v285
    %548 = vrot.lane.b32.xlu0 %v545, 64
    %v549 = vpop.permute.xlu0 %548
    %v551 = vmul.f32 %v545, %v549
    %553 = vrot.lane.b32.xlu0 %v551, 32
    %v554 = vpop.permute.xlu0 %553
    %v556 = vadd.f32 %v546, %v554
    %v557 = vtanh.pop %v556
    %559 = vrot.lane.b32.xlu0 %v557, 64
    %v560 = vpop.permute.xlu0 %559
    %v562 = vmul.f32 %v545, %v560
    %564 = vrot.lane.b32.xlu0 %v562, 32
    %v565 = vpop.permute.xlu0 %564
    %v566 = vsel %vm192, %v565, 0
    %568 = vmatprep.subr.mxu0 0.0
    %569 = vmatpush1.msra.mxu0 0.0
    %570 = vmatprep.subr.mxu0 0.0
    %571 = vmatpush1.msra.mxu0 0.0
    %572 = vmatprep.subr.mxu0 0.0
    %573 = vmatpush1.msra.mxu0 0.0
    %574 = vmatprep.subr.mxu0 0.0
    %575 = vmatpush1.msra.mxu0 0.0
    %576 = vmatprep.subr.mxu0 0.0
    %577 = vmatpush1.msra.mxu0 0.0
    %578 = vmatprep.subr.mxu0 0.0
    %579 = vmatpush1.msra.mxu0 0.0
    %580 = vmatprep.subr.mxu0 0.0
    %581 = vmatpush1.msra.mxu0 0.0
    %582 = vmatprep.subr.mxu0 0.0
    %583 = vmatpush1.msra.mxu0 0.0
    %584 = vmatprep.subr.mxu0 0.0
    %585 = vmatpush1.msra.mxu0 0.0
    %586 = vmatprep.subr.mxu0 0.0
    %587 = vmatpush1.msra.mxu0 0.0
    %588 = vmatprep.subr.mxu0 0.0
    %589 = vmatpush1.msra.mxu0 0.0
    %590 = vmatprep.subr.mxu0 0.0
    %591 = vmatpush1.msra.mxu0 0.0
    %592 = vmatprep.subr.mxu0 0.0
    %593 = vmatpush1.msra.mxu0 %v36
    %594 = vmatprep.subr.mxu0 0.0
    %595 = vmatpush1.msra.mxu0 %v35
    %596 = vmatprep.subr.mxu0 0.0
    %597 = vmatpush1.msra.mxu0 %v34
    %598 = vmatprep.subr.mxu0 0.0
    %599 = vmatpush1.msra.mxu0 %v33
    %600 = vmatprep.subr.mxu0 0.0
    %601 = vmatpush2.msra.mxu0 0.0
    %602 = vmatprep.subr.mxu0 0.0
    %603 = vmatpush2.msra.mxu0 0.0
    %604 = vmatprep.subr.mxu0 0.0
    %605 = vmatpush2.msra.mxu0 0.0
    %606 = vmatprep.subr.mxu0 0.0
    %607 = vmatpush2.msra.mxu0 0.0
    %608 = vmatprep.subr.mxu0 0.0
    %609 = vmatpush2.msra.mxu0 0.0
    %610 = vmatprep.subr.mxu0 0.0
    %611 = vmatpush2.msra.mxu0 0.0
    %612 = vmatprep.subr.mxu0 0.0
    %613 = vmatpush2.msra.mxu0 0.0
    %614 = vmatprep.subr.mxu0 0.0
    %615 = vmatpush2.msra.mxu0 0.0
    %616 = vmatprep.subr.mxu0 0.0
    %617 = vmatpush2.msra.mxu0 0.0
    %618 = vmatprep.subr.mxu0 0.0
    %619 = vmatpush2.msra.mxu0 0.0
    %620 = vmatprep.subr.mxu0 0.0
    %621 = vmatpush2.msra.mxu0 0.0
    %622 = vmatprep.subr.mxu0 0.0
    %623 = vmatpush2.msra.mxu0 0.0
    %624 = vmatprep.subr.mxu0 0.0
    %625 = vmatpush2.msra.mxu0 0.0
    %626 = vmatprep.subr.mxu0 0.0
    %627 = vmatpush2.msra.mxu0 0.0
    %628 = vmatprep.subr.mxu0 0.0
    %629 = vmatpush2.msra.mxu0 0.0
    %630 = vmatprep.subr.mxu0 0.0
    %631 = vmatpush2.msra.mxu0 0.0
    %632 = vmatprep.mubr.f32.mxu0 0.0
    %633 = vmatmul.mubr.f32.gmra.mxu0 %v566
    %v634 = vpop.f32.mrf.mxu0
    %v635 = vadd.f32 %v295, %v634
    %v636 = vpop.f32.mrf.mxu0
    %637 = vdwg.mxu0
    %639 = vrot.lane.b32.xlu0 %v466, 32
    %v640 = vpop.permute.xlu0 %639
    %v641 = vsel %vm192, %v640, 0
    %643 = vmatprep.subr.mxu0 0.0
    %644 = vmatpush1.msra.mxu0 0.0
    %645 = vmatprep.subr.mxu0 0.0
    %646 = vmatpush1.msra.mxu0 0.0
    %647 = vmatprep.subr.mxu0 0.0
    %648 = vmatpush1.msra.mxu0 0.0
    %649 = vmatprep.subr.mxu0 0.0
    %650 = vmatpush1.msra.mxu0 0.0
    %651 = vmatprep.subr.mxu0 0.0
    %652 = vmatpush1.msra.mxu0 0.0
    %653 = vmatprep.subr.mxu0 0.0
    %654 = vmatpush1.msra.mxu0 0.0
    %655 = vmatprep.subr.mxu0 0.0
    %656 = vmatpush1.msra.mxu0 0.0
    %657 = vmatprep.subr.mxu0 0.0
    %658 = vmatpush1.msra.mxu0 0.0
    %659 = vmatprep.subr.mxu0 0.0
    %660 = vmatpush1.msra.mxu0 0.0
    %661 = vmatprep.subr.mxu0 0.0
    %662 = vmatpush1.msra.mxu0 0.0
    %663 = vmatprep.subr.mxu0 0.0
    %664 = vmatpush1.msra.mxu0 0.0
    %665 = vmatprep.subr.mxu0 0.0
    %666 = vmatpush1.msra.mxu0 0.0
    %667 = vmatprep.subr.mxu0 0.0
    %668 = vmatpush1.msra.mxu0 %v40
    %669 = vmatprep.subr.mxu0 0.0
    %670 = vmatpush1.msra.mxu0 %v39
    %671 = vmatprep.subr.mxu0 0.0
    %672 = vmatpush1.msra.mxu0 %v38
    %673 = vmatprep.subr.mxu0 0.0
    %674 = vmatpush1.msra.mxu0 %v37
    %675 = vmatprep.subr.mxu0 0.0
    %676 = vmatpush2.msra.mxu0 0.0
    %677 = vmatprep.subr.mxu0 0.0
    %678 = vmatpush2.msra.mxu0 0.0
    %679 = vmatprep.subr.mxu0 0.0
    %680 = vmatpush2.msra.mxu0 0.0
    %681 = vmatprep.subr.mxu0 0.0
    %682 = vmatpush2.msra.mxu0 0.0
    %683 = vmatprep.subr.mxu0 0.0
    %684 = vmatpush2.msra.mxu0 0.0
    %685 = vmatprep.subr.mxu0 0.0
    %686 = vmatpush2.msra.mxu0 0.0
    %687 = vmatprep.subr.mxu0 0.0
    %688 = vmatpush2.msra.mxu0 0.0
    %689 = vmatprep.subr.mxu0 0.0
    %690 = vmatpush2.msra.mxu0 0.0
    %691 = vmatprep.subr.mxu0 0.0
    %692 = vmatpush2.msra.mxu0 0.0
    %693 = vmatprep.subr.mxu0 0.0
    %694 = vmatpush2.msra.mxu0 0.0
    %695 = vmatprep.subr.mxu0 0.0
    %696 = vmatpush2.msra.mxu0 0.0
    %697 = vmatprep.subr.mxu0 0.0
    %698 = vmatpush2.msra.mxu0 0.0
    %699 = vmatprep.subr.mxu0 0.0
    %700 = vmatpush2.msra.mxu0 0.0
    %701 = vmatprep.subr.mxu0 0.0
    %702 = vmatpush2.msra.mxu0 0.0
    %703 = vmatprep.subr.mxu0 0.0
    %704 = vmatpush2.msra.mxu0 0.0
    %705 = vmatprep.subr.mxu0 0.0
    %706 = vmatpush2.msra.mxu0 0.0
    %707 = vmatprep.mubr.f32.mxu0 0.0
    %708 = vmatmul.mubr.f32.gmra.mxu0 %v641
    %v709 = vpop.f32.mrf.mxu0
    %v710 = vadd.f32 %v635, %v709
    %v711 = vpop.f32.mrf.mxu0
    %712 = vdwg.mxu0
    %v713 = vxor.u32 %v710, 2147483648
    %v714 = vmul.f32 %v713, 1.442695
    %v715 = vpow.pop %v714
    %v716 = vadd.f32 %v715, 1.0
    %v717 = vrcp.pop %v716
    %v718 = vmul.f32 1.0, %v717
    %v719 = vmul.f32 %v718, 2.0
    %v720 = vsub.f32 %v719, 1.0
    %v721 = vsel %vm49, %v720, %v718
    %v722 = vmul.f32 %v721, %v460
    %724 = vrot.lane.b32.xlu0 %v721, 64
    %v725 = vpop.permute.xlu0 %724
    %v727 = vmul.f32 %v721, %v725
    %729 = vrot.lane.b32.xlu0 %v727, 32
    %v730 = vpop.permute.xlu0 %729
    %v732 = vadd.f32 %v722, %v730
    %v733 = vtanh.pop %v732
    %735 = vrot.lane.b32.xlu0 %v733, 64
    %v736 = vpop.permute.xlu0 %735
    %v738 = vmul.f32 %v721, %v736
    %739 = vmatprep.subr.mxu0 0.0
    %740 = vmatpush1.msra.mxu0 0.0
    %741 = vmatprep.subr.mxu0 0.0
    %742 = vmatpush1.msra.mxu0 0.0
    %743 = vmatprep.subr.mxu0 0.0
    %744 = vmatpush1.msra.mxu0 0.0
    %745 = vmatprep.subr.mxu0 0.0
    %746 = vmatpush1.msra.mxu0 0.0
    %747 = vmatprep.subr.mxu0 0.0
    %748 = vmatpush1.msra.mxu0 0.0
    %749 = vmatprep.subr.mxu0 0.0
    %750 = vmatpush1.msra.mxu0 0.0
    %751 = vmatprep.subr.mxu0 0.0
    %752 = vmatpush1.msra.mxu0 0.0
    %753 = vmatprep.subr.mxu0 0.0
    %754 = vmatpush1.msra.mxu0 0.0
    %755 = vmatprep.subr.mxu0 0.0
    %756 = vmatpush1.msra.mxu0 0.0
    %757 = vmatprep.subr.mxu0 0.0
    %758 = vmatpush1.msra.mxu0 0.0
    %759 = vmatprep.subr.mxu0 0.0
    %760 = vmatpush1.msra.mxu0 0.0
    %761 = vmatprep.subr.mxu0 0.0
    %762 = vmatpush1.msra.mxu0 0.0
    %763 = vmatprep.subr.mxu0 0.0
    %764 = vmatpush1.msra.mxu0 %v32
    %765 = vmatprep.subr.mxu0 0.0
    %766 = vmatpush1.msra.mxu0 %v31
    %767 = vmatprep.subr.mxu0 0.0
    %768 = vmatpush1.msra.mxu0 %v30
    %769 = vmatprep.subr.mxu0 0.0
    %770 = vmatpush1.msra.mxu0 %v29
    %771 = vmatprep.subr.mxu0 0.0
    %772 = vmatpush2.msra.mxu0 0.0
    %773 = vmatprep.subr.mxu0 0.0
    %774 = vmatpush2.msra.mxu0 0.0
    %775 = vmatprep.subr.mxu0 0.0
    %776 = vmatpush2.msra.mxu0 0.0
    %777 = vmatprep.subr.mxu0 0.0
    %778 = vmatpush2.msra.mxu0 0.0
    %779 = vmatprep.subr.mxu0 0.0
    %780 = vmatpush2.msra.mxu0 0.0
    %781 = vmatprep.subr.mxu0 0.0
    %782 = vmatpush2.msra.mxu0 0.0
    %783 = vmatprep.subr.mxu0 0.0
    %784 = vmatpush2.msra.mxu0 0.0
    %785 = vmatprep.subr.mxu0 0.0
    %786 = vmatpush2.msra.mxu0 0.0
    %787 = vmatprep.subr.mxu0 0.0
    %788 = vmatpush2.msra.mxu0 0.0
    %789 = vmatprep.subr.mxu0 0.0
    %790 = vmatpush2.msra.mxu0 0.0
    %791 = vmatprep.subr.mxu0 0.0
    %792 = vmatpush2.msra.mxu0 0.0
    %793 = vmatprep.subr.mxu0 0.0
    %794 = vmatpush2.msra.mxu0 0.0
    %795 = vmatprep.subr.mxu0 0.0
    %796 = vmatpush2.msra.mxu0 0.0
    %797 = vmatprep.subr.mxu0 0.0
    %798 = vmatpush2.msra.mxu0 0.0
    %799 = vmatprep.subr.mxu0 0.0
    %800 = vmatpush2.msra.mxu0 0.0
    %801 = vmatprep.subr.mxu0 0.0
    %802 = vmatpush2.msra.mxu0 0.0
    %803 = vmatprep.mubr.f32.mxu0 0.0
    %804 = vmatmul.mubr.f32.gmra.mxu0 %v566
    %v805 = vpop.f32.mrf.mxu0
    %v806 = vadd.f32 %v164, %v805
    %v807 = vpop.f32.mrf.mxu0
    %808 = vdwg.mxu0
    %v809 = vxor.u32 %v806, 2147483648
    %v810 = vmul.f32 %v809, 1.442695
    %v811 = vpow.pop %v810
    %v812 = vadd.f32 %v811, 1.0
    %v813 = vrcp.pop %v812
    %v814 = vmul.f32 1.0, %v813
    %v815 = vmul.f32 %v814, 2.0
    %v816 = vsub.f32 %v815, 1.0
    %v817 = vsel %vm49, %v816, %v814
    %v818 = vmul.f32 %v817, %v556
    %820 = vrot.lane.b32.xlu0 %v817, 64
    %v821 = vpop.permute.xlu0 %820
    %v823 = vmul.f32 %v817, %v821
    %825 = vrot.lane.b32.xlu0 %v823, 32
    %v826 = vpop.permute.xlu0 %825
    %v828 = vadd.f32 %v818, %v826
    %v829 = vtanh.pop %v828
    %831 = vrot.lane.b32.xlu0 %v829, 64
    %v832 = vpop.permute.xlu0 %831
    %v834 = vmul.f32 %v817, %v832
    %836 = vrot.lane.b32.xlu0 %v834, 32
    %v837 = vpop.permute.xlu0 %836
    %v838 = vsel %vm192, %v837, 0
    %840 = vmatprep.subr.mxu0 0.0
    %841 = vmatpush1.msra.mxu0 0.0
    %842 = vmatprep.subr.mxu0 0.0
    %843 = vmatpush1.msra.mxu0 0.0
    %844 = vmatprep.subr.mxu0 0.0
    %845 = vmatpush1.msra.mxu0 0.0
    %846 = vmatprep.subr.mxu0 0.0
    %847 = vmatpush1.msra.mxu0 0.0
    %848 = vmatprep.subr.mxu0 0.0
    %849 = vmatpush1.msra.mxu0 0.0
    %850 = vmatprep.subr.mxu0 0.0
    %851 = vmatpush1.msra.mxu0 0.0
    %852 = vmatprep.subr.mxu0 0.0
    %853 = vmatpush1.msra.mxu0 0.0
    %854 = vmatprep.subr.mxu0 0.0
    %855 = vmatpush1.msra.mxu0 0.0
    %856 = vmatprep.subr.mxu0 0.0
    %857 = vmatpush1.msra.mxu0 0.0
    %858 = vmatprep.subr.mxu0 0.0
    %859 = vmatpush1.msra.mxu0 0.0
    %860 = vmatprep.subr.mxu0 0.0
    %861 = vmatpush1.msra.mxu0 0.0
    %862 = vmatprep.subr.mxu0 0.0
    %863 = vmatpush1.msra.mxu0 0.0
    %864 = vmatprep.subr.mxu0 0.0
    %865 = vmatpush1.msra.mxu0 %v36
    %866 = vmatprep.subr.mxu0 0.0
    %867 = vmatpush1.msra.mxu0 %v35
    %868 = vmatprep.subr.mxu0 0.0
    %869 = vmatpush1.msra.mxu0 %v34
    %870 = vmatprep.subr.mxu0 0.0
    %871 = vmatpush1.msra.mxu0 %v33
    %872 = vmatprep.subr.mxu0 0.0
    %873 = vmatpush2.msra.mxu0 0.0
    %874 = vmatprep.subr.mxu0 0.0
    %875 = vmatpush2.msra.mxu0 0.0
    %876 = vmatprep.subr.mxu0 0.0
    %877 = vmatpush2.msra.mxu0 0.0
    %878 = vmatprep.subr.mxu0 0.0
    %879 = vmatpush2.msra.mxu0 0.0
    %880 = vmatprep.subr.mxu0 0.0
    %881 = vmatpush2.msra.mxu0 0.0
    %882 = vmatprep.subr.mxu0 0.0
    %883 = vmatpush2.msra.mxu0 0.0
    %884 = vmatprep.subr.mxu0 0.0
    %885 = vmatpush2.msra.mxu0 0.0
    %886 = vmatprep.subr.mxu0 0.0
    %887 = vmatpush2.msra.mxu0 0.0
    %888 = vmatprep.subr.mxu0 0.0
    %889 = vmatpush2.msra.mxu0 0.0
    %890 = vmatprep.subr.mxu0 0.0
    %891 = vmatpush2.msra.mxu0 0.0
    %892 = vmatprep.subr.mxu0 0.0
    %893 = vmatpush2.msra.mxu0 0.0
    %894 = vmatprep.subr.mxu0 0.0
    %895 = vmatpush2.msra.mxu0 0.0
    %896 = vmatprep.subr.mxu0 0.0
    %897 = vmatpush2.msra.mxu0 0.0
    %898 = vmatprep.subr.mxu0 0.0
    %899 = vmatpush2.msra.mxu0 0.0
    %900 = vmatprep.subr.mxu0 0.0
    %901 = vmatpush2.msra.mxu0 0.0
    %902 = vmatprep.subr.mxu0 0.0
    %903 = vmatpush2.msra.mxu0 0.0
    %904 = vmatprep.mubr.f32.mxu0 0.0
    %905 = vmatmul.mubr.f32.gmra.mxu0 %v838
    %v906 = vpop.f32.mrf.mxu0
    %v907 = vadd.f32 %v295, %v906
    %v908 = vpop.f32.mrf.mxu0
    %909 = vdwg.mxu0
    %911 = vrot.lane.b32.xlu0 %v738, 32
    %v912 = vpop.permute.xlu0 %911
    %v913 = vsel %vm192, %v912, 0
    %915 = vmatprep.subr.mxu0 0.0
    %916 = vmatpush1.msra.mxu0 0.0
    %917 = vmatprep.subr.mxu0 0.0
    %918 = vmatpush1.msra.mxu0 0.0
    %919 = vmatprep.subr.mxu0 0.0
    %920 = vmatpush1.msra.mxu0 0.0
    %921 = vmatprep.subr.mxu0 0.0
    %922 = vmatpush1.msra.mxu0 0.0
    %923 = vmatprep.subr.mxu0 0.0
    %924 = vmatpush1.msra.mxu0 0.0
    %925 = vmatprep.subr.mxu0 0.0
    %926 = vmatpush1.msra.mxu0 0.0
    %927 = vmatprep.subr.mxu0 0.0
    %928 = vmatpush1.msra.mxu0 0.0
    %929 = vmatprep.subr.mxu0 0.0
    %930 = vmatpush1.msra.mxu0 0.0
    %931 = vmatprep.subr.mxu0 0.0
    %932 = vmatpush1.msra.mxu0 0.0
    %933 = vmatprep.subr.mxu0 0.0
    %934 = vmatpush1.msra.mxu0 0.0
    %935 = vmatprep.subr.mxu0 0.0
    %936 = vmatpush1.msra.mxu0 0.0
    %937 = vmatprep.subr.mxu0 0.0
    %938 = vmatpush1.msra.mxu0 0.0
    %939 = vmatprep.subr.mxu0 0.0
    %940 = vmatpush1.msra.mxu0 %v40
    %941 = vmatprep.subr.mxu0 0.0
    %942 = vmatpush1.msra.mxu0 %v39
    %943 = vmatprep.subr.mxu0 0.0
    %944 = vmatpush1.msra.mxu0 %v38
    %945 = vmatprep.subr.mxu0 0.0
    %946 = vmatpush1.msra.mxu0 %v37
    %947 = vmatprep.subr.mxu0 0.0
    %948 = vmatpush2.msra.mxu0 0.0
    %949 = vmatprep.subr.mxu0 0.0
    %950 = vmatpush2.msra.mxu0 0.0
    %951 = vmatprep.subr.mxu0 0.0
    %952 = vmatpush2.msra.mxu0 0.0
    %953 = vmatprep.subr.mxu0 0.0
    %954 = vmatpush2.msra.mxu0 0.0
    %955 = vmatprep.subr.mxu0 0.0
    %956 = vmatpush2.msra.mxu0 0.0
    %957 = vmatprep.subr.mxu0 0.0
    %958 = vmatpush2.msra.mxu0 0.0
    %959 = vmatprep.subr.mxu0 0.0
    %960 = vmatpush2.msra.mxu0 0.0
    %961 = vmatprep.subr.mxu0 0.0
    %962 = vmatpush2.msra.mxu0 0.0
    %963 = vmatprep.subr.mxu0 0.0
    %964 = vmatpush2.msra.mxu0 0.0
    %965 = vmatprep.subr.mxu0 0.0
    %966 = vmatpush2.msra.mxu0 0.0
    %967 = vmatprep.subr.mxu0 0.0
    %968 = vmatpush2.msra.mxu0 0.0
    %969 = vmatprep.subr.mxu0 0.0
    %970 = vmatpush2.msra.mxu0 0.0
    %971 = vmatprep.subr.mxu0 0.0
    %972 = vmatpush2.msra.mxu0 0.0
    %973 = vmatprep.subr.mxu0 0.0
    %974 = vmatpush2.msra.mxu0 0.0
    %975 = vmatprep.subr.mxu0 0.0
    %976 = vmatpush2.msra.mxu0 0.0
    %977 = vmatprep.subr.mxu0 0.0
    %978 = vmatpush2.msra.mxu0 0.0
    %979 = vmatprep.mubr.f32.mxu0 0.0
    %980 = vmatmul.mubr.f32.gmra.mxu0 %v913
    %v981 = vpop.f32.mrf.mxu0
    %v982 = vadd.f32 %v907, %v981
    %v983 = vpop.f32.mrf.mxu0
    %984 = vdwg.mxu0
    %v985 = vxor.u32 %v982, 2147483648
    %v986 = vmul.f32 %v985, 1.442695
    %v987 = vpow.pop %v986
    %v988 = vadd.f32 %v987, 1.0
    %v989 = vrcp.pop %v988
    %v990 = vmul.f32 1.0, %v989
    %v991 = vmul.f32 %v990, 2.0
    %v992 = vsub.f32 %v991, 1.0
    %v993 = vsel %vm49, %v992, %v990
    %v994 = vmul.f32 %v993, %v732
    %996 = vrot.lane.b32.xlu0 %v993, 64
    %v997 = vpop.permute.xlu0 %996
    %v999 = vmul.f32 %v993, %v997
    %1001 = vrot.lane.b32.xlu0 %v999, 32
    %v1002 = vpop.permute.xlu0 %1001
    %v1004 = vadd.f32 %v994, %v1002
    %v1005 = vtanh.pop %v1004
    %1007 = vrot.lane.b32.xlu0 %v1005, 64
    %v1008 = vpop.permute.xlu0 %1007
    %v1010 = vmul.f32 %v993, %v1008
    %1011 = vmatprep.subr.mxu0 0.0
    %1012 = vmatpush1.msra.mxu0 0.0
    %1013 = vmatprep.subr.mxu0 0.0
    %1014 = vmatpush1.msra.mxu0 0.0
    %1015 = vmatprep.subr.mxu0 0.0
    %1016 = vmatpush1.msra.mxu0 0.0
    %1017 = vmatprep.subr.mxu0 0.0
    %1018 = vmatpush1.msra.mxu0 0.0
    %1019 = vmatprep.subr.mxu0 0.0
    %1020 = vmatpush1.msra.mxu0 0.0
    %1021 = vmatprep.subr.mxu0 0.0
    %1022 = vmatpush1.msra.mxu0 0.0
    %1023 = vmatprep.subr.mxu0 0.0
    %1024 = vmatpush1.msra.mxu0 0.0
    %1025 = vmatprep.subr.mxu0 0.0
    %1026 = vmatpush1.msra.mxu0 0.0
    %1027 = vmatprep.subr.mxu0 0.0
    %1028 = vmatpush1.msra.mxu0 0.0
    %1029 = vmatprep.subr.mxu0 0.0
    %1030 = vmatpush1.msra.mxu0 0.0
    %1031 = vmatprep.subr.mxu0 0.0
    %1032 = vmatpush1.msra.mxu0 0.0
    %1033 = vmatprep.subr.mxu0 0.0
    %1034 = vmatpush1.msra.mxu0 0.0
    %1035 = vmatprep.subr.mxu0 0.0
    %1036 = vmatpush1.msra.mxu0 %v32
    %1037 = vmatprep.subr.mxu0 0.0
    %1038 = vmatpush1.msra.mxu0 %v31
    %1039 = vmatprep.subr.mxu0 0.0
    %1040 = vmatpush1.msra.mxu0 %v30
    %1041 = vmatprep.subr.mxu0 0.0
    %1042 = vmatpush1.msra.mxu0 %v29
    %1043 = vmatprep.subr.mxu0 0.0
    %1044 = vmatpush2.msra.mxu0 0.0
    %1045 = vmatprep.subr.mxu0 0.0
    %1046 = vmatpush2.msra.mxu0 0.0
    %1047 = vmatprep.subr.mxu0 0.0
    %1048 = vmatpush2.msra.mxu0 0.0
    %1049 = vmatprep.subr.mxu0 0.0
    %1050 = vmatpush2.msra.mxu0 0.0
    %1051 = vmatprep.subr.mxu0 0.0
    %1052 = vmatpush2.msra.mxu0 0.0
    %1053 = vmatprep.subr.mxu0 0.0
    %1054 = vmatpush2.msra.mxu0 0.0
    %1055 = vmatprep.subr.mxu0 0.0
    %1056 = vmatpush2.msra.mxu0 0.0
    %1057 = vmatprep.subr.mxu0 0.0
    %1058 = vmatpush2.msra.mxu0 0.0
    %1059 = vmatprep.subr.mxu0 0.0
    %1060 = vmatpush2.msra.mxu0 0.0
    %1061 = vmatprep.subr.mxu0 0.0
    %1062 = vmatpush2.msra.mxu0 0.0
    %1063 = vmatprep.subr.mxu0 0.0
    %1064 = vmatpush2.msra.mxu0 0.0
    %1065 = vmatprep.subr.mxu0 0.0
    %1066 = vmatpush2.msra.mxu0 0.0
    %1067 = vmatprep.subr.mxu0 0.0
    %1068 = vmatpush2.msra.mxu0 0.0
    %1069 = vmatprep.subr.mxu0 0.0
    %1070 = vmatpush2.msra.mxu0 0.0
    %1071 = vmatprep.subr.mxu0 0.0
    %1072 = vmatpush2.msra.mxu0 0.0
    %1073 = vmatprep.subr.mxu0 0.0
    %1074 = vmatpush2.msra.mxu0 0.0
    %1075 = vmatprep.mubr.f32.mxu0 0.0
    %1076 = vmatmul.mubr.f32.gmra.mxu0 %v838
    %v1077 = vpop.f32.mrf.mxu0
    %v1078 = vadd.f32 %v169, %v1077
    %v1079 = vpop.f32.mrf.mxu0
    %1080 = vdwg.mxu0
    %v1081 = vxor.u32 %v1078, 2147483648
    %v1082 = vmul.f32 %v1081, 1.442695
    %v1083 = vpow.pop %v1082
    %v1084 = vadd.f32 %v1083, 1.0
    %v1085 = vrcp.pop %v1084
    %v1086 = vmul.f32 1.0, %v1085
    %v1087 = vmul.f32 %v1086, 2.0
    %v1088 = vsub.f32 %v1087, 1.0
    %v1089 = vsel %vm49, %v1088, %v1086
    %v1090 = vmul.f32 %v1089, %v828
    %1092 = vrot.lane.b32.xlu0 %v1089, 64
    %v1093 = vpop.permute.xlu0 %1092
    %v1095 = vmul.f32 %v1089, %v1093
    %1097 = vrot.lane.b32.xlu0 %v1095, 32
    %v1098 = vpop.permute.xlu0 %1097
    %v1100 = vadd.f32 %v1090, %v1098
    %v1101 = vtanh.pop %v1100
    %1103 = vrot.lane.b32.xlu0 %v1101, 64
    %v1104 = vpop.permute.xlu0 %1103
    %v1106 = vmul.f32 %v1089, %v1104
    %1108 = vrot.lane.b32.xlu0 %v1106, 32
    %v1109 = vpop.permute.xlu0 %1108
    %v1110 = vsel %vm192, %v1109, 0
    %1112 = vmatprep.subr.mxu0 0.0
    %1113 = vmatpush1.msra.mxu0 0.0
    %1114 = vmatprep.subr.mxu0 0.0
    %1115 = vmatpush1.msra.mxu0 0.0
    %1116 = vmatprep.subr.mxu0 0.0
    %1117 = vmatpush1.msra.mxu0 0.0
    %1118 = vmatprep.subr.mxu0 0.0
    %1119 = vmatpush1.msra.mxu0 0.0
    %1120 = vmatprep.subr.mxu0 0.0
    %1121 = vmatpush1.msra.mxu0 0.0
    %1122 = vmatprep.subr.mxu0 0.0
    %1123 = vmatpush1.msra.mxu0 0.0
    %1124 = vmatprep.subr.mxu0 0.0
    %1125 = vmatpush1.msra.mxu0 0.0
    %1126 = vmatprep.subr.mxu0 0.0
    %1127 = vmatpush1.msra.mxu0 0.0
    %1128 = vmatprep.subr.mxu0 0.0
    %1129 = vmatpush1.msra.mxu0 0.0
    %1130 = vmatprep.subr.mxu0 0.0
    %1131 = vmatpush1.msra.mxu0 0.0
    %1132 = vmatprep.subr.mxu0 0.0
    %1133 = vmatpush1.msra.mxu0 0.0
    %1134 = vmatprep.subr.mxu0 0.0
    %1135 = vmatpush1.msra.mxu0 0.0
    %1136 = vmatprep.subr.mxu0 0.0
    %1137 = vmatpush1.msra.mxu0 %v36
    %1138 = vmatprep.subr.mxu0 0.0
    %1139 = vmatpush1.msra.mxu0 %v35
    %1140 = vmatprep.subr.mxu0 0.0
    %1141 = vmatpush1.msra.mxu0 %v34
    %1142 = vmatprep.subr.mxu0 0.0
    %1143 = vmatpush1.msra.mxu0 %v33
    %1144 = vmatprep.subr.mxu0 0.0
    %1145 = vmatpush2.msra.mxu0 0.0
    %1146 = vmatprep.subr.mxu0 0.0
    %1147 = vmatpush2.msra.mxu0 0.0
    %1148 = vmatprep.subr.mxu0 0.0
    %1149 = vmatpush2.msra.mxu0 0.0
    %1150 = vmatprep.subr.mxu0 0.0
    %1151 = vmatpush2.msra.mxu0 0.0
    %1152 = vmatprep.subr.mxu0 0.0
    %1153 = vmatpush2.msra.mxu0 0.0
    %1154 = vmatprep.subr.mxu0 0.0
    %1155 = vmatpush2.msra.mxu0 0.0
    %1156 = vmatprep.subr.mxu0 0.0
    %1157 = vmatpush2.msra.mxu0 0.0
    %1158 = vmatprep.subr.mxu0 0.0
    %1159 = vmatpush2.msra.mxu0 0.0
    %1160 = vmatprep.subr.mxu0 0.0
    %1161 = vmatpush2.msra.mxu0 0.0
    %1162 = vmatprep.subr.mxu0 0.0
    %1163 = vmatpush2.msra.mxu0 0.0
    %1164 = vmatprep.subr.mxu0 0.0
    %1165 = vmatpush2.msra.mxu0 0.0
    %1166 = vmatprep.subr.mxu0 0.0
    %1167 = vmatpush2.msra.mxu0 0.0
    %1168 = vmatprep.subr.mxu0 0.0
    %1169 = vmatpush2.msra.mxu0 0.0
    %1170 = vmatprep.subr.mxu0 0.0
    %1171 = vmatpush2.msra.mxu0 0.0
    %1172 = vmatprep.subr.mxu0 0.0
    %1173 = vmatpush2.msra.mxu0 0.0
    %1174 = vmatprep.subr.mxu0 0.0
    %1175 = vmatpush2.msra.mxu0 0.0
    %1176 = vmatprep.mubr.f32.mxu0 0.0
    %1177 = vmatmul.mubr.f32.gmra.mxu0 %v1110
    %v1178 = vpop.f32.mrf.mxu0
    %v1179 = vadd.f32 %v295, %v1178
    %v1180 = vpop.f32.mrf.mxu0
    %1181 = vdwg.mxu0
    %1183 = vrot.lane.b32.xlu0 %v1010, 32
    %v1184 = vpop.permute.xlu0 %1183
    %v1185 = vsel %vm192, %v1184, 0
    %1187 = vmatprep.subr.mxu0 0.0
    %1188 = vmatpush1.msra.mxu0 0.0
    %1189 = vmatprep.subr.mxu0 0.0
    %1190 = vmatpush1.msra.mxu0 0.0
    %1191 = vmatprep.subr.mxu0 0.0
    %1192 = vmatpush1.msra.mxu0 0.0
    %1193 = vmatprep.subr.mxu0 0.0
    %1194 = vmatpush1.msra.mxu0 0.0
    %1195 = vmatprep.subr.mxu0 0.0
    %1196 = vmatpush1.msra.mxu0 0.0
    %1197 = vmatprep.subr.mxu0 0.0
    %1198 = vmatpush1.msra.mxu0 0.0
    %1199 = vmatprep.subr.mxu0 0.0
    %1200 = vmatpush1.msra.mxu0 0.0
    %1201 = vmatprep.subr.mxu0 0.0
    %1202 = vmatpush1.msra.mxu0 0.0
    %1203 = vmatprep.subr.mxu0 0.0
    %1204 = vmatpush1.msra.mxu0 0.0
    %1205 = vmatprep.subr.mxu0 0.0
    %1206 = vmatpush1.msra.mxu0 0.0
    %1207 = vmatprep.subr.mxu0 0.0
    %1208 = vmatpush1.msra.mxu0 0.0
    %1209 = vmatprep.subr.mxu0 0.0
    %1210 = vmatpush1.msra.mxu0 0.0
    %1211 = vmatprep.subr.mxu0 0.0
    %1212 = vmatpush1.msra.mxu0 %v40
    %1213 = vmatprep.subr.mxu0 0.0
    %1214 = vmatpush1.msra.mxu0 %v39
    %1215 = vmatprep.subr.mxu0 0.0
    %1216 = vmatpush1.msra.mxu0 %v38
    %1217 = vmatprep.subr.mxu0 0.0
    %1218 = vmatpush1.msra.mxu0 %v37
    %1219 = vmatprep.subr.mxu0 0.0
    %1220 = vmatpush2.msra.mxu0 0.0
    %1221 = vmatprep.subr.mxu0 0.0
    %1222 = vmatpush2.msra.mxu0 0.0
    %1223 = vmatprep.subr.mxu0 0.0
    %1224 = vmatpush2.msra.mxu0 0.0
    %1225 = vmatprep.subr.mxu0 0.0
    %1226 = vmatpush2.msra.mxu0 0.0
    %1227 = vmatprep.subr.mxu0 0.0
    %1228 = vmatpush2.msra.mxu0 0.0
    %1229 = vmatprep.subr.mxu0 0.0
    %1230 = vmatpush2.msra.mxu0 0.0
    %1231 = vmatprep.subr.mxu0 0.0
    %1232 = vmatpush2.msra.mxu0 0.0
    %1233 = vmatprep.subr.mxu0 0.0
    %1234 = vmatpush2.msra.mxu0 0.0
    %1235 = vmatprep.subr.mxu0 0.0
    %1236 = vmatpush2.msra.mxu0 0.0
    %1237 = vmatprep.subr.mxu0 0.0
    %1238 = vmatpush2.msra.mxu0 0.0
    %1239 = vmatprep.subr.mxu0 0.0
    %1240 = vmatpush2.msra.mxu0 0.0
    %1241 = vmatprep.subr.mxu0 0.0
    %1242 = vmatpush2.msra.mxu0 0.0
    %1243 = vmatprep.subr.mxu0 0.0
    %1244 = vmatpush2.msra.mxu0 0.0
    %1245 = vmatprep.subr.mxu0 0.0
    %1246 = vmatpush2.msra.mxu0 0.0
    %1247 = vmatprep.subr.mxu0 0.0
    %1248 = vmatpush2.msra.mxu0 0.0
    %1249 = vmatprep.subr.mxu0 0.0
    %1250 = vmatpush2.msra.mxu0 0.0
    %1251 = vmatprep.mubr.f32.mxu0 0.0
    %1252 = vmatmul.mubr.f32.gmra.mxu0 %v1185
    %v1253 = vpop.f32.mrf.mxu0
    %v1254 = vadd.f32 %v1179, %v1253
    %v1255 = vpop.f32.mrf.mxu0
    %1256 = vdwg.mxu0
    %v1257 = vxor.u32 %v1254, 2147483648
    %v1258 = vmul.f32 %v1257, 1.442695
    %v1259 = vpow.pop %v1258
    %v1260 = vadd.f32 %v1259, 1.0
    %v1261 = vrcp.pop %v1260
    %v1262 = vmul.f32 1.0, %v1261
    %v1263 = vmul.f32 %v1262, 2.0
    %v1264 = vsub.f32 %v1263, 1.0
    %v1265 = vsel %vm49, %v1264, %v1262
    %v1266 = vmul.f32 %v1265, %v1004
    %1268 = vrot.lane.b32.xlu0 %v1265, 64
    %v1269 = vpop.permute.xlu0 %1268
    %v1271 = vmul.f32 %v1265, %v1269
    %1273 = vrot.lane.b32.xlu0 %v1271, 32
    %v1274 = vpop.permute.xlu0 %1273
    %v1276 = vadd.f32 %v1266, %v1274
    %v1277 = vtanh.pop %v1276
    %1279 = vrot.lane.b32.xlu0 %v1277, 64
    %v1280 = vpop.permute.xlu0 %1279
    %v1282 = vmul.f32 %v1265, %v1280
    %1283 = vmatprep.subr.mxu0 0.0
    %1284 = vmatpush1.msra.mxu0 0.0
    %1285 = vmatprep.subr.mxu0 0.0
    %1286 = vmatpush1.msra.mxu0 0.0
    %1287 = vmatprep.subr.mxu0 0.0
    %1288 = vmatpush1.msra.mxu0 0.0
    %1289 = vmatprep.subr.mxu0 0.0
    %1290 = vmatpush1.msra.mxu0 0.0
    %1291 = vmatprep.subr.mxu0 0.0
    %1292 = vmatpush1.msra.mxu0 0.0
    %1293 = vmatprep.subr.mxu0 0.0
    %1294 = vmatpush1.msra.mxu0 0.0
    %1295 = vmatprep.subr.mxu0 0.0
    %1296 = vmatpush1.msra.mxu0 0.0
    %1297 = vmatprep.subr.mxu0 0.0
    %1298 = vmatpush1.msra.mxu0 0.0
    %1299 = vmatprep.subr.mxu0 0.0
    %1300 = vmatpush1.msra.mxu0 0.0
    %1301 = vmatprep.subr.mxu0 0.0
    %1302 = vmatpush1.msra.mxu0 0.0
    %1303 = vmatprep.subr.mxu0 0.0
    %1304 = vmatpush1.msra.mxu0 0.0
    %1305 = vmatprep.subr.mxu0 0.0
    %1306 = vmatpush1.msra.mxu0 0.0
    %1307 = vmatprep.subr.mxu0 0.0
    %1308 = vmatpush1.msra.mxu0 %v32
    %1309 = vmatprep.subr.mxu0 0.0
    %1310 = vmatpush1.msra.mxu0 %v31
    %1311 = vmatprep.subr.mxu0 0.0
    %1312 = vmatpush1.msra.mxu0 %v30
    %1313 = vmatprep.subr.mxu0 0.0
    %1314 = vmatpush1.msra.mxu0 %v29
    %1315 = vmatprep.subr.mxu0 0.0
    %1316 = vmatpush2.msra.mxu0 0.0
    %1317 = vmatprep.subr.mxu0 0.0
    %1318 = vmatpush2.msra.mxu0 0.0
    %1319 = vmatprep.subr.mxu0 0.0
    %1320 = vmatpush2.msra.mxu0 0.0
    %1321 = vmatprep.subr.mxu0 0.0
    %1322 = vmatpush2.msra.mxu0 0.0
    %1323 = vmatprep.subr.mxu0 0.0
    %1324 = vmatpush2.msra.mxu0 0.0
    %1325 = vmatprep.subr.mxu0 0.0
    %1326 = vmatpush2.msra.mxu0 0.0
    %1327 = vmatprep.subr.mxu0 0.0
    %1328 = vmatpush2.msra.mxu0 0.0
    %1329 = vmatprep.subr.mxu0 0.0
    %1330 = vmatpush2.msra.mxu0 0.0
    %1331 = vmatprep.subr.mxu0 0.0
    %1332 = vmatpush2.msra.mxu0 0.0
    %1333 = vmatprep.subr.mxu0 0.0
    %1334 = vmatpush2.msra.mxu0 0.0
    %1335 = vmatprep.subr.mxu0 0.0
    %1336 = vmatpush2.msra.mxu0 0.0
    %1337 = vmatprep.subr.mxu0 0.0
    %1338 = vmatpush2.msra.mxu0 0.0
    %1339 = vmatprep.subr.mxu0 0.0
    %1340 = vmatpush2.msra.mxu0 0.0
    %1341 = vmatprep.subr.mxu0 0.0
    %1342 = vmatpush2.msra.mxu0 0.0
    %1343 = vmatprep.subr.mxu0 0.0
    %1344 = vmatpush2.msra.mxu0 0.0
    %1345 = vmatprep.subr.mxu0 0.0
    %1346 = vmatpush2.msra.mxu0 0.0
    %1347 = vmatprep.mubr.f32.mxu0 0.0
    %1348 = vmatmul.mubr.f32.gmra.mxu0 %v1110
    %v1349 = vpop.f32.mrf.mxu0
    %v1350 = vadd.f32 %v174, %v1349
    %v1351 = vpop.f32.mrf.mxu0
    %1352 = vdwg.mxu0
    %v1353 = vxor.u32 %v1350, 2147483648
    %v1354 = vmul.f32 %v1353, 1.442695
    %v1355 = vpow.pop %v1354
    %v1356 = vadd.f32 %v1355, 1.0
    %v1357 = vrcp.pop %v1356
    %v1358 = vmul.f32 1.0, %v1357
    %v1359 = vmul.f32 %v1358, 2.0
    %v1360 = vsub.f32 %v1359, 1.0
    %v1361 = vsel %vm49, %v1360, %v1358
    %v1362 = vmul.f32 %v1361, %v1100
    %1364 = vrot.lane.b32.xlu0 %v1361, 64
    %v1365 = vpop.permute.xlu0 %1364
    %v1367 = vmul.f32 %v1361, %v1365
    %1369 = vrot.lane.b32.xlu0 %v1367, 32
    %v1370 = vpop.permute.xlu0 %1369
    %v1372 = vadd.f32 %v1362, %v1370
    %v1373 = vtanh.pop %v1372
    %1375 = vrot.lane.b32.xlu0 %v1373, 64
    %v1376 = vpop.permute.xlu0 %1375
    %v1378 = vmul.f32 %v1361, %v1376
    %1380 = vrot.lane.b32.xlu0 %v1378, 32
    %v1381 = vpop.permute.xlu0 %1380
    %v1382 = vsel %vm192, %v1381, 0
    %1384 = vmatprep.subr.mxu0 0.0
    %1385 = vmatpush1.msra.mxu0 0.0
    %1386 = vmatprep.subr.mxu0 0.0
    %1387 = vmatpush1.msra.mxu0 0.0
    %1388 = vmatprep.subr.mxu0 0.0
    %1389 = vmatpush1.msra.mxu0 0.0
    %1390 = vmatprep.subr.mxu0 0.0
    %1391 = vmatpush1.msra.mxu0 0.0
    %1392 = vmatprep.subr.mxu0 0.0
    %1393 = vmatpush1.msra.mxu0 0.0
    %1394 = vmatprep.subr.mxu0 0.0
    %1395 = vmatpush1.msra.mxu0 0.0
    %1396 = vmatprep.subr.mxu0 0.0
    %1397 = vmatpush1.msra.mxu0 0.0
    %1398 = vmatprep.subr.mxu0 0.0
    %1399 = vmatpush1.msra.mxu0 0.0
    %1400 = vmatprep.subr.mxu0 0.0
    %1401 = vmatpush1.msra.mxu0 0.0
    %1402 = vmatprep.subr.mxu0 0.0
    %1403 = vmatpush1.msra.mxu0 0.0
    %1404 = vmatprep.subr.mxu0 0.0
    %1405 = vmatpush1.msra.mxu0 0.0
    %1406 = vmatprep.subr.mxu0 0.0
    %1407 = vmatpush1.msra.mxu0 0.0
    %1408 = vmatprep.subr.mxu0 0.0
    %1409 = vmatpush1.msra.mxu0 %v36
    %1410 = vmatprep.subr.mxu0 0.0
    %1411 = vmatpush1.msra.mxu0 %v35
    %1412 = vmatprep.subr.mxu0 0.0
    %1413 = vmatpush1.msra.mxu0 %v34
    %1414 = vmatprep.subr.mxu0 0.0
    %1415 = vmatpush1.msra.mxu0 %v33
    %1416 = vmatprep.subr.mxu0 0.0
    %1417 = vmatpush2.msra.mxu0 0.0
    %1418 = vmatprep.subr.mxu0 0.0
    %1419 = vmatpush2.msra.mxu0 0.0
    %1420 = vmatprep.subr.mxu0 0.0
    %1421 = vmatpush2.msra.mxu0 0.0
    %1422 = vmatprep.subr.mxu0 0.0
    %1423 = vmatpush2.msra.mxu0 0.0
    %1424 = vmatprep.subr.mxu0 0.0
    %1425 = vmatpush2.msra.mxu0 0.0
    %1426 = vmatprep.subr.mxu0 0.0
    %1427 = vmatpush2.msra.mxu0 0.0
    %1428 = vmatprep.subr.mxu0 0.0
    %1429 = vmatpush2.msra.mxu0 0.0
    %1430 = vmatprep.subr.mxu0 0.0
    %1431 = vmatpush2.msra.mxu0 0.0
    %1432 = vmatprep.subr.mxu0 0.0
    %1433 = vmatpush2.msra.mxu0 0.0
    %1434 = vmatprep.subr.mxu0 0.0
    %1435 = vmatpush2.msra.mxu0 0.0
    %1436 = vmatprep.subr.mxu0 0.0
    %1437 = vmatpush2.msra.mxu0 0.0
    %1438 = vmatprep.subr.mxu0 0.0
    %1439 = vmatpush2.msra.mxu0 0.0
    %1440 = vmatprep.subr.mxu0 0.0
    %1441 = vmatpush2.msra.mxu0 0.0
    %1442 = vmatprep.subr.mxu0 0.0
    %1443 = vmatpush2.msra.mxu0 0.0
    %1444 = vmatprep.subr.mxu0 0.0
    %1445 = vmatpush2.msra.mxu0 0.0
    %1446 = vmatprep.subr.mxu0 0.0
    %1447 = vmatpush2.msra.mxu0 0.0
    %1448 = vmatprep.mubr.f32.mxu0 0.0
    %1449 = vmatmul.mubr.f32.gmra.mxu0 %v1382
    %v1450 = vpop.f32.mrf.mxu0
    %v1451 = vadd.f32 %v295, %v1450
    %v1452 = vpop.f32.mrf.mxu0
    %1453 = vdwg.mxu0
    %1455 = vrot.lane.b32.xlu0 %v1282, 32
    %v1456 = vpop.permute.xlu0 %1455
    %v1457 = vsel %vm192, %v1456, 0
    %1459 = vmatprep.subr.mxu0 0.0
    %1460 = vmatpush1.msra.mxu0 0.0
    %1461 = vmatprep.subr.mxu0 0.0
    %1462 = vmatpush1.msra.mxu0 0.0
    %1463 = vmatprep.subr.mxu0 0.0
    %1464 = vmatpush1.msra.mxu0 0.0
    %1465 = vmatprep.subr.mxu0 0.0
    %1466 = vmatpush1.msra.mxu0 0.0
    %1467 = vmatprep.subr.mxu0 0.0
    %1468 = vmatpush1.msra.mxu0 0.0
    %1469 = vmatprep.subr.mxu0 0.0
    %1470 = vmatpush1.msra.mxu0 0.0
    %1471 = vmatprep.subr.mxu0 0.0
    %1472 = vmatpush1.msra.mxu0 0.0
    %1473 = vmatprep.subr.mxu0 0.0
    %1474 = vmatpush1.msra.mxu0 0.0
    %1475 = vmatprep.subr.mxu0 0.0
    %1476 = vmatpush1.msra.mxu0 0.0
    %1477 = vmatprep.subr.mxu0 0.0
    %1478 = vmatpush1.msra.mxu0 0.0
    %1479 = vmatprep.subr.mxu0 0.0
    %1480 = vmatpush1.msra.mxu0 0.0
    %1481 = vmatprep.subr.mxu0 0.0
    %1482 = vmatpush1.msra.mxu0 0.0
    %1483 = vmatprep.subr.mxu0 0.0
    %1484 = vmatpush1.msra.mxu0 %v40
    %1485 = vmatprep.subr.mxu0 0.0
    %1486 = vmatpush1.msra.mxu0 %v39
    %1487 = vmatprep.subr.mxu0 0.0
    %1488 = vmatpush1.msra.mxu0 %v38
    %1489 = vmatprep.subr.mxu0 0.0
    %1490 = vmatpush1.msra.mxu0 %v37
    %1491 = vmatprep.subr.mxu0 0.0
    %1492 = vmatpush2.msra.mxu0 0.0
    %1493 = vmatprep.subr.mxu0 0.0
    %1494 = vmatpush2.msra.mxu0 0.0
    %1495 = vmatprep.subr.mxu0 0.0
    %1496 = vmatpush2.msra.mxu0 0.0
    %1497 = vmatprep.subr.mxu0 0.0
    %1498 = vmatpush2.msra.mxu0 0.0
    %1499 = vmatprep.subr.mxu0 0.0
    %1500 = vmatpush2.msra.mxu0 0.0
    %1501 = vmatprep.subr.mxu0 0.0
    %1502 = vmatpush2.msra.mxu0 0.0
    %1503 = vmatprep.subr.mxu0 0.0
    %1504 = vmatpush2.msra.mxu0 0.0
    %1505 = vmatprep.subr.mxu0 0.0
    %1506 = vmatpush2.msra.mxu0 0.0
    %1507 = vmatprep.subr.mxu0 0.0
    %1508 = vmatpush2.msra.mxu0 0.0
    %1509 = vmatprep.subr.mxu0 0.0
    %1510 = vmatpush2.msra.mxu0 0.0
    %1511 = vmatprep.subr.mxu0 0.0
    %1512 = vmatpush2.msra.mxu0 0.0
    %1513 = vmatprep.subr.mxu0 0.0
    %1514 = vmatpush2.msra.mxu0 0.0
    %1515 = vmatprep.subr.mxu0 0.0
    %1516 = vmatpush2.msra.mxu0 0.0
    %1517 = vmatprep.subr.mxu0 0.0
    %1518 = vmatpush2.msra.mxu0 0.0
    %1519 = vmatprep.subr.mxu0 0.0
    %1520 = vmatpush2.msra.mxu0 0.0
    %1521 = vmatprep.subr.mxu0 0.0
    %1522 = vmatpush2.msra.mxu0 0.0
    %1523 = vmatprep.mubr.f32.mxu0 0.0
    %1524 = vmatmul.mubr.f32.gmra.mxu0 %v1457
    %v1525 = vpop.f32.mrf.mxu0
    %v1526 = vadd.f32 %v1451, %v1525
    %v1527 = vpop.f32.mrf.mxu0
    %1528 = vdwg.mxu0
    %v1529 = vxor.u32 %v1526, 2147483648
    %v1530 = vmul.f32 %v1529, 1.442695
    %v1531 = vpow.pop %v1530
    %v1532 = vadd.f32 %v1531, 1.0
    %v1533 = vrcp.pop %v1532
    %v1534 = vmul.f32 1.0, %v1533
    %v1535 = vmul.f32 %v1534, 2.0
    %v1536 = vsub.f32 %v1535, 1.0
    %v1537 = vsel %vm49, %v1536, %v1534
    %v1538 = vmul.f32 %v1537, %v1276
    %1540 = vrot.lane.b32.xlu0 %v1537, 64
    %v1541 = vpop.permute.xlu0 %1540
    %v1543 = vmul.f32 %v1537, %v1541
    %1545 = vrot.lane.b32.xlu0 %v1543, 32
    %v1546 = vpop.permute.xlu0 %1545
    %v1548 = vadd.f32 %v1538, %v1546
    %v1549 = vtanh.pop %v1548
    %1551 = vrot.lane.b32.xlu0 %v1549, 64
    %v1552 = vpop.permute.xlu0 %1551
    %v1554 = vmul.f32 %v1537, %v1552
    %1555 = vmatprep.subr.mxu0 0.0
    %1556 = vmatpush1.msra.mxu0 0.0
    %1557 = vmatprep.subr.mxu0 0.0
    %1558 = vmatpush1.msra.mxu0 0.0
    %1559 = vmatprep.subr.mxu0 0.0
    %1560 = vmatpush1.msra.mxu0 0.0
    %1561 = vmatprep.subr.mxu0 0.0
    %1562 = vmatpush1.msra.mxu0 0.0
    %1563 = vmatprep.subr.mxu0 0.0
    %1564 = vmatpush1.msra.mxu0 0.0
    %1565 = vmatprep.subr.mxu0 0.0
    %1566 = vmatpush1.msra.mxu0 0.0
    %1567 = vmatprep.subr.mxu0 0.0
    %1568 = vmatpush1.msra.mxu0 0.0
    %1569 = vmatprep.subr.mxu0 0.0
    %1570 = vmatpush1.msra.mxu0 0.0
    %1571 = vmatprep.subr.mxu0 0.0
    %1572 = vmatpush1.msra.mxu0 0.0
    %1573 = vmatprep.subr.mxu0 0.0
    %1574 = vmatpush1.msra.mxu0 0.0
    %1575 = vmatprep.subr.mxu0 0.0
    %1576 = vmatpush1.msra.mxu0 0.0
    %1577 = vmatprep.subr.mxu0 0.0
    %1578 = vmatpush1.msra.mxu0 0.0
    %1579 = vmatprep.subr.mxu0 0.0
    %1580 = vmatpush1.msra.mxu0 %v32
    %1581 = vmatprep.subr.mxu0 0.0
    %1582 = vmatpush1.msra.mxu0 %v31
    %1583 = vmatprep.subr.mxu0 0.0
    %1584 = vmatpush1.msra.mxu0 %v30
    %1585 = vmatprep.subr.mxu0 0.0
    %1586 = vmatpush1.msra.mxu0 %v29
    %1587 = vmatprep.subr.mxu0 0.0
    %1588 = vmatpush2.msra.mxu0 0.0
    %1589 = vmatprep.subr.mxu0 0.0
    %1590 = vmatpush2.msra.mxu0 0.0
    %1591 = vmatprep.subr.mxu0 0.0
    %1592 = vmatpush2.msra.mxu0 0.0
    %1593 = vmatprep.subr.mxu0 0.0
    %1594 = vmatpush2.msra.mxu0 0.0
    %1595 = vmatprep.subr.mxu0 0.0
    %1596 = vmatpush2.msra.mxu0 0.0
    %1597 = vmatprep.subr.mxu0 0.0
    %1598 = vmatpush2.msra.mxu0 0.0
    %1599 = vmatprep.subr.mxu0 0.0
    %1600 = vmatpush2.msra.mxu0 0.0
    %1601 = vmatprep.subr.mxu0 0.0
    %1602 = vmatpush2.msra.mxu0 0.0
    %1603 = vmatprep.subr.mxu0 0.0
    %1604 = vmatpush2.msra.mxu0 0.0
    %1605 = vmatprep.subr.mxu0 0.0
    %1606 = vmatpush2.msra.mxu0 0.0
    %1607 = vmatprep.subr.mxu0 0.0
    %1608 = vmatpush2.msra.mxu0 0.0
    %1609 = vmatprep.subr.mxu0 0.0
    %1610 = vmatpush2.msra.mxu0 0.0
    %1611 = vmatprep.subr.mxu0 0.0
    %1612 = vmatpush2.msra.mxu0 0.0
    %1613 = vmatprep.subr.mxu0 0.0
    %1614 = vmatpush2.msra.mxu0 0.0
    %1615 = vmatprep.subr.mxu0 0.0
    %1616 = vmatpush2.msra.mxu0 0.0
    %1617 = vmatprep.subr.mxu0 0.0
    %1618 = vmatpush2.msra.mxu0 0.0
    %1619 = vmatprep.mubr.f32.mxu0 0.0
    %1620 = vmatmul.mubr.f32.gmra.mxu0 %v1382
    %v1621 = vpop.f32.mrf.mxu0
    %v1622 = vadd.f32 %v179, %v1621
    %v1623 = vpop.f32.mrf.mxu0
    %1624 = vdwg.mxu0
    %v1625 = vxor.u32 %v1622, 2147483648
    %v1626 = vmul.f32 %v1625, 1.442695
    %v1627 = vpow.pop %v1626
    %v1628 = vadd.f32 %v1627, 1.0
    %v1629 = vrcp.pop %v1628
    %v1630 = vmul.f32 1.0, %v1629
    %v1631 = vmul.f32 %v1630, 2.0
    %v1632 = vsub.f32 %v1631, 1.0
    %v1633 = vsel %vm49, %v1632, %v1630
    %v1634 = vmul.f32 %v1633, %v1372
    %1636 = vrot.lane.b32.xlu0 %v1633, 64
    %v1637 = vpop.permute.xlu0 %1636
    %v1639 = vmul.f32 %v1633, %v1637
    %1641 = vrot.lane.b32.xlu0 %v1639, 32
    %v1642 = vpop.permute.xlu0 %1641
    %v1644 = vadd.f32 %v1634, %v1642
    %v1645 = vtanh.pop %v1644
    %1647 = vrot.lane.b32.xlu0 %v1645, 64
    %v1648 = vpop.permute.xlu0 %1647
    %v1650 = vmul.f32 %v1633, %v1648
    %1652 = vrot.lane.b32.xlu0 %v1650, 32
    %v1653 = vpop.permute.xlu0 %1652
    %v1654 = vsel %vm192, %v1653, 0
    %1656 = vmatprep.subr.mxu0 0.0
    %1657 = vmatpush1.msra.mxu0 0.0
    %1658 = vmatprep.subr.mxu0 0.0
    %1659 = vmatpush1.msra.mxu0 0.0
    %1660 = vmatprep.subr.mxu0 0.0
    %1661 = vmatpush1.msra.mxu0 0.0
    %1662 = vmatprep.subr.mxu0 0.0
    %1663 = vmatpush1.msra.mxu0 0.0
    %1664 = vmatprep.subr.mxu0 0.0
    %1665 = vmatpush1.msra.mxu0 0.0
    %1666 = vmatprep.subr.mxu0 0.0
    %1667 = vmatpush1.msra.mxu0 0.0
    %1668 = vmatprep.subr.mxu0 0.0
    %1669 = vmatpush1.msra.mxu0 0.0
    %1670 = vmatprep.subr.mxu0 0.0
    %1671 = vmatpush1.msra.mxu0 0.0
    %1672 = vmatprep.subr.mxu0 0.0
    %1673 = vmatpush1.msra.mxu0 0.0
    %1674 = vmatprep.subr.mxu0 0.0
    %1675 = vmatpush1.msra.mxu0 0.0
    %1676 = vmatprep.subr.mxu0 0.0
    %1677 = vmatpush1.msra.mxu0 0.0
    %1678 = vmatprep.subr.mxu0 0.0
    %1679 = vmatpush1.msra.mxu0 0.0
    %1680 = vmatprep.subr.mxu0 0.0
    %1681 = vmatpush1.msra.mxu0 %v36
    %1682 = vmatprep.subr.mxu0 0.0
    %1683 = vmatpush1.msra.mxu0 %v35
    %1684 = vmatprep.subr.mxu0 0.0
    %1685 = vmatpush1.msra.mxu0 %v34
    %1686 = vmatprep.subr.mxu0 0.0
    %1687 = vmatpush1.msra.mxu0 %v33
    %1688 = vmatprep.subr.mxu0 0.0
    %1689 = vmatpush2.msra.mxu0 0.0
    %1690 = vmatprep.subr.mxu0 0.0
    %1691 = vmatpush2.msra.mxu0 0.0
    %1692 = vmatprep.subr.mxu0 0.0
    %1693 = vmatpush2.msra.mxu0 0.0
    %1694 = vmatprep.subr.mxu0 0.0
    %1695 = vmatpush2.msra.mxu0 0.0
    %1696 = vmatprep.subr.mxu0 0.0
    %1697 = vmatpush2.msra.mxu0 0.0
    %1698 = vmatprep.subr.mxu0 0.0
    %1699 = vmatpush2.msra.mxu0 0.0
    %1700 = vmatprep.subr.mxu0 0.0
    %1701 = vmatpush2.msra.mxu0 0.0
    %1702 = vmatprep.subr.mxu0 0.0
    %1703 = vmatpush2.msra.mxu0 0.0
    %1704 = vmatprep.subr.mxu0 0.0
    %1705 = vmatpush2.msra.mxu0 0.0
    %1706 = vmatprep.subr.mxu0 0.0
    %1707 = vmatpush2.msra.mxu0 0.0
    %1708 = vmatprep.subr.mxu0 0.0
    %1709 = vmatpush2.msra.mxu0 0.0
    %1710 = vmatprep.subr.mxu0 0.0
    %1711 = vmatpush2.msra.mxu0 0.0
    %1712 = vmatprep.subr.mxu0 0.0
    %1713 = vmatpush2.msra.mxu0 0.0
    %1714 = vmatprep.subr.mxu0 0.0
    %1715 = vmatpush2.msra.mxu0 0.0
    %1716 = vmatprep.subr.mxu0 0.0
    %1717 = vmatpush2.msra.mxu0 0.0
    %1718 = vmatprep.subr.mxu0 0.0
    %1719 = vmatpush2.msra.mxu0 0.0
    %1720 = vmatprep.mubr.f32.mxu0 0.0
    %1721 = vmatmul.mubr.f32.gmra.mxu0 %v1654
    %v1722 = vpop.f32.mrf.mxu0
    %v1723 = vadd.f32 %v295, %v1722
    %v1724 = vpop.f32.mrf.mxu0
    %1725 = vdwg.mxu0
    %1727 = vrot.lane.b32.xlu0 %v1554, 32
    %v1728 = vpop.permute.xlu0 %1727
    %v1729 = vsel %vm192, %v1728, 0
    %1731 = vmatprep.subr.mxu0 0.0
    %1732 = vmatpush1.msra.mxu0 0.0
    %1733 = vmatprep.subr.mxu0 0.0
    %1734 = vmatpush1.msra.mxu0 0.0
    %1735 = vmatprep.subr.mxu0 0.0
    %1736 = vmatpush1.msra.mxu0 0.0
    %1737 = vmatprep.subr.mxu0 0.0
    %1738 = vmatpush1.msra.mxu0 0.0
    %1739 = vmatprep.subr.mxu0 0.0
    %1740 = vmatpush1.msra.mxu0 0.0
    %1741 = vmatprep.subr.mxu0 0.0
    %1742 = vmatpush1.msra.mxu0 0.0
    %1743 = vmatprep.subr.mxu0 0.0
    %1744 = vmatpush1.msra.mxu0 0.0
    %1745 = vmatprep.subr.mxu0 0.0
    %1746 = vmatpush1.msra.mxu0 0.0
    %1747 = vmatprep.subr.mxu0 0.0
    %1748 = vmatpush1.msra.mxu0 0.0
    %1749 = vmatprep.subr.mxu0 0.0
    %1750 = vmatpush1.msra.mxu0 0.0
    %1751 = vmatprep.subr.mxu0 0.0
    %1752 = vmatpush1.msra.mxu0 0.0
    %1753 = vmatprep.subr.mxu0 0.0
    %1754 = vmatpush1.msra.mxu0 0.0
    %1755 = vmatprep.subr.mxu0 0.0
    %1756 = vmatpush1.msra.mxu0 %v40
    %1757 = vmatprep.subr.mxu0 0.0
    %1758 = vmatpush1.msra.mxu0 %v39
    %1759 = vmatprep.subr.mxu0 0.0
    %1760 = vmatpush1.msra.mxu0 %v38
    %1761 = vmatprep.subr.mxu0 0.0
    %1762 = vmatpush1.msra.mxu0 %v37
    %1763 = vmatprep.subr.mxu0 0.0
    %1764 = vmatpush2.msra.mxu0 0.0
    %1765 = vmatprep.subr.mxu0 0.0
    %1766 = vmatpush2.msra.mxu0 0.0
    %1767 = vmatprep.subr.mxu0 0.0
    %1768 = vmatpush2.msra.mxu0 0.0
    %1769 = vmatprep.subr.mxu0 0.0
    %1770 = vmatpush2.msra.mxu0 0.0
    %1771 = vmatprep.subr.mxu0 0.0
    %1772 = vmatpush2.msra.mxu0 0.0
    %1773 = vmatprep.subr.mxu0 0.0
    %1774 = vmatpush2.msra.mxu0 0.0
    %1775 = vmatprep.subr.mxu0 0.0
    %1776 = vmatpush2.msra.mxu0 0.0
    %1777 = vmatprep.subr.mxu0 0.0
    %1778 = vmatpush2.msra.mxu0 0.0
    %1779 = vmatprep.subr.mxu0 0.0
    %1780 = vmatpush2.msra.mxu0 0.0
    %1781 = vmatprep.subr.mxu0 0.0
    %1782 = vmatpush2.msra.mxu0 0.0
    %1783 = vmatprep.subr.mxu0 0.0
    %1784 = vmatpush2.msra.mxu0 0.0
    %1785 = vmatprep.subr.mxu0 0.0
    %1786 = vmatpush2.msra.mxu0 0.0
    %1787 = vmatprep.subr.mxu0 0.0
    %1788 = vmatpush2.msra.mxu0 0.0
    %1789 = vmatprep.subr.mxu0 0.0
    %1790 = vmatpush2.msra.mxu0 0.0
    %1791 = vmatprep.subr.mxu0 0.0
    %1792 = vmatpush2.msra.mxu0 0.0
    %1793 = vmatprep.subr.mxu0 0.0
    %1794 = vmatpush2.msra.mxu0 0.0
    %1795 = vmatprep.mubr.f32.mxu0 0.0
    %1796 = vmatmul.mubr.f32.gmra.mxu0 %v1729
    %v1797 = vpop.f32.mrf.mxu0
    %v1798 = vadd.f32 %v1723, %v1797
    %v1799 = vpop.f32.mrf.mxu0
    %1800 = vdwg.mxu0
    %v1801 = vxor.u32 %v1798, 2147483648
    %v1802 = vmul.f32 %v1801, 1.442695
    %v1803 = vpow.pop %v1802
    %v1804 = vadd.f32 %v1803, 1.0
    %v1805 = vrcp.pop %v1804
    %v1806 = vmul.f32 1.0, %v1805
    %v1807 = vmul.f32 %v1806, 2.0
    %v1808 = vsub.f32 %v1807, 1.0
    %v1809 = vsel %vm49, %v1808, %v1806
    %v1810 = vmul.f32 %v1809, %v1548
    %1812 = vrot.lane.b32.xlu0 %v1809, 64
    %v1813 = vpop.permute.xlu0 %1812
    %v1815 = vmul.f32 %v1809, %v1813
    %1817 = vrot.lane.b32.xlu0 %v1815, 32
    %v1818 = vpop.permute.xlu0 %1817
    %v1820 = vadd.f32 %v1810, %v1818
    %v1821 = vtanh.pop %v1820
    %1823 = vrot.lane.b32.xlu0 %v1821, 64
    %v1824 = vpop.permute.xlu0 %1823
    %v1826 = vmul.f32 %v1809, %v1824
    %1827 = vmatprep.subr.mxu0 0.0
    %1828 = vmatpush1.msra.mxu0 0.0
    %1829 = vmatprep.subr.mxu0 0.0
    %1830 = vmatpush1.msra.mxu0 0.0
    %1831 = vmatprep.subr.mxu0 0.0
    %1832 = vmatpush1.msra.mxu0 0.0
    %1833 = vmatprep.subr.mxu0 0.0
    %1834 = vmatpush1.msra.mxu0 0.0
    %1835 = vmatprep.subr.mxu0 0.0
    %1836 = vmatpush1.msra.mxu0 0.0
    %1837 = vmatprep.subr.mxu0 0.0
    %1838 = vmatpush1.msra.mxu0 0.0
    %1839 = vmatprep.subr.mxu0 0.0
    %1840 = vmatpush1.msra.mxu0 0.0
    %1841 = vmatprep.subr.mxu0 0.0
    %1842 = vmatpush1.msra.mxu0 0.0
    %1843 = vmatprep.subr.mxu0 0.0
    %1844 = vmatpush1.msra.mxu0 0.0
    %1845 = vmatprep.subr.mxu0 0.0
    %1846 = vmatpush1.msra.mxu0 0.0
    %1847 = vmatprep.subr.mxu0 0.0
    %1848 = vmatpush1.msra.mxu0 0.0
    %1849 = vmatprep.subr.mxu0 0.0
    %1850 = vmatpush1.msra.mxu0 0.0
    %1851 = vmatprep.subr.mxu0 0.0
    %1852 = vmatpush1.msra.mxu0 %v32
    %1853 = vmatprep.subr.mxu0 0.0
    %1854 = vmatpush1.msra.mxu0 %v31
    %1855 = vmatprep.subr.mxu0 0.0
    %1856 = vmatpush1.msra.mxu0 %v30
    %1857 = vmatprep.subr.mxu0 0.0
    %1858 = vmatpush1.msra.mxu0 %v29
    %1859 = vmatprep.subr.mxu0 0.0
    %1860 = vmatpush2.msra.mxu0 0.0
    %1861 = vmatprep.subr.mxu0 0.0
    %1862 = vmatpush2.msra.mxu0 0.0
    %1863 = vmatprep.subr.mxu0 0.0
    %1864 = vmatpush2.msra.mxu0 0.0
    %1865 = vmatprep.subr.mxu0 0.0
    %1866 = vmatpush2.msra.mxu0 0.0
    %1867 = vmatprep.subr.mxu0 0.0
    %1868 = vmatpush2.msra.mxu0 0.0
    %1869 = vmatprep.subr.mxu0 0.0
    %1870 = vmatpush2.msra.mxu0 0.0
    %1871 = vmatprep.subr.mxu0 0.0
    %1872 = vmatpush2.msra.mxu0 0.0
    %1873 = vmatprep.subr.mxu0 0.0
    %1874 = vmatpush2.msra.mxu0 0.0
    %1875 = vmatprep.subr.mxu0 0.0
    %1876 = vmatpush2.msra.mxu0 0.0
    %1877 = vmatprep.subr.mxu0 0.0
    %1878 = vmatpush2.msra.mxu0 0.0
    %1879 = vmatprep.subr.mxu0 0.0
    %1880 = vmatpush2.msra.mxu0 0.0
    %1881 = vmatprep.subr.mxu0 0.0
    %1882 = vmatpush2.msra.mxu0 0.0
    %1883 = vmatprep.subr.mxu0 0.0
    %1884 = vmatpush2.msra.mxu0 0.0
    %1885 = vmatprep.subr.mxu0 0.0
    %1886 = vmatpush2.msra.mxu0 0.0
    %1887 = vmatprep.subr.mxu0 0.0
    %1888 = vmatpush2.msra.mxu0 0.0
    %1889 = vmatprep.subr.mxu0 0.0
    %1890 = vmatpush2.msra.mxu0 0.0
    %1891 = vmatprep.mubr.f32.mxu0 0.0
    %1892 = vmatmul.mubr.f32.gmra.mxu0 %v1654
    %v1893 = vpop.f32.mrf.mxu0
    %v1894 = vadd.f32 %v184, %v1893
    %v1895 = vpop.f32.mrf.mxu0
    %1896 = vdwg.mxu0
    %v1897 = vxor.u32 %v1894, 2147483648
    %v1898 = vmul.f32 %v1897, 1.442695
    %v1899 = vpow.pop %v1898
    %v1900 = vadd.f32 %v1899, 1.0
    %v1901 = vrcp.pop %v1900
    %v1902 = vmul.f32 1.0, %v1901
    %v1903 = vmul.f32 %v1902, 2.0
    %v1904 = vsub.f32 %v1903, 1.0
    %v1905 = vsel %vm49, %v1904, %v1902
    %v1906 = vmul.f32 %v1905, %v1644
    %1908 = vrot.lane.b32.xlu0 %v1905, 64
    %v1909 = vpop.permute.xlu0 %1908
    %v1911 = vmul.f32 %v1905, %v1909
    %1913 = vrot.lane.b32.xlu0 %v1911, 32
    %v1914 = vpop.permute.xlu0 %1913
    %v1916 = vadd.f32 %v1906, %v1914
    %v1917 = vtanh.pop %v1916
    %1919 = vrot.lane.b32.xlu0 %v1917, 64
    %v1920 = vpop.permute.xlu0 %1919
    %v1922 = vmul.f32 %v1905, %v1920
    %1924 = vrot.lane.b32.xlu0 %v1922, 32
    %v1925 = vpop.permute.xlu0 %1924
    %v1926 = vsel %vm192, %v1925, 0
    %1928 = vmatprep.subr.mxu0 0.0
    %1929 = vmatpush1.msra.mxu0 0.0
    %1930 = vmatprep.subr.mxu0 0.0
    %1931 = vmatpush1.msra.mxu0 0.0
    %1932 = vmatprep.subr.mxu0 0.0
    %1933 = vmatpush1.msra.mxu0 0.0
    %1934 = vmatprep.subr.mxu0 0.0
    %1935 = vmatpush1.msra.mxu0 0.0
    %1936 = vmatprep.subr.mxu0 0.0
    %1937 = vmatpush1.msra.mxu0 0.0
    %1938 = vmatprep.subr.mxu0 0.0
    %1939 = vmatpush1.msra.mxu0 0.0
    %1940 = vmatprep.subr.mxu0 0.0
    %1941 = vmatpush1.msra.mxu0 0.0
    %1942 = vmatprep.subr.mxu0 0.0
    %1943 = vmatpush1.msra.mxu0 0.0
    %1944 = vmatprep.subr.mxu0 0.0
    %1945 = vmatpush1.msra.mxu0 0.0
    %1946 = vmatprep.subr.mxu0 0.0
    %1947 = vmatpush1.msra.mxu0 0.0
    %1948 = vmatprep.subr.mxu0 0.0
    %1949 = vmatpush1.msra.mxu0 0.0
    %1950 = vmatprep.subr.mxu0 0.0
    %1951 = vmatpush1.msra.mxu0 0.0
    %1952 = vmatprep.subr.mxu0 0.0
    %1953 = vmatpush1.msra.mxu0 %v36
    %1954 = vmatprep.subr.mxu0 0.0
    %1955 = vmatpush1.msra.mxu0 %v35
    %1956 = vmatprep.subr.mxu0 0.0
    %1957 = vmatpush1.msra.mxu0 %v34
    %1958 = vmatprep.subr.mxu0 0.0
    %1959 = vmatpush1.msra.mxu0 %v33
    %1960 = vmatprep.subr.mxu0 0.0
    %1961 = vmatpush2.msra.mxu0 0.0
    %1962 = vmatprep.subr.mxu0 0.0
    %1963 = vmatpush2.msra.mxu0 0.0
    %1964 = vmatprep.subr.mxu0 0.0
    %1965 = vmatpush2.msra.mxu0 0.0
    %1966 = vmatprep.subr.mxu0 0.0
    %1967 = vmatpush2.msra.mxu0 0.0
    %1968 = vmatprep.subr.mxu0 0.0
    %1969 = vmatpush2.msra.mxu0 0.0
    %1970 = vmatprep.subr.mxu0 0.0
    %1971 = vmatpush2.msra.mxu0 0.0
    %1972 = vmatprep.subr.mxu0 0.0
    %1973 = vmatpush2.msra.mxu0 0.0
    %1974 = vmatprep.subr.mxu0 0.0
    %1975 = vmatpush2.msra.mxu0 0.0
    %1976 = vmatprep.subr.mxu0 0.0
    %1977 = vmatpush2.msra.mxu0 0.0
    %1978 = vmatprep.subr.mxu0 0.0
    %1979 = vmatpush2.msra.mxu0 0.0
    %1980 = vmatprep.subr.mxu0 0.0
    %1981 = vmatpush2.msra.mxu0 0.0
    %1982 = vmatprep.subr.mxu0 0.0
    %1983 = vmatpush2.msra.mxu0 0.0
    %1984 = vmatprep.subr.mxu0 0.0
    %1985 = vmatpush2.msra.mxu0 0.0
    %1986 = vmatprep.subr.mxu0 0.0
    %1987 = vmatpush2.msra.mxu0 0.0
    %1988 = vmatprep.subr.mxu0 0.0
    %1989 = vmatpush2.msra.mxu0 0.0
    %1990 = vmatprep.subr.mxu0 0.0
    %1991 = vmatpush2.msra.mxu0 0.0
    %1992 = vmatprep.mubr.f32.mxu0 0.0
    %1993 = vmatmul.mubr.f32.gmra.mxu0 %v1926
    %v1994 = vpop.f32.mrf.mxu0
    %v1995 = vadd.f32 %v295, %v1994
    %v1996 = vpop.f32.mrf.mxu0
    %1997 = vdwg.mxu0
    %1999 = vrot.lane.b32.xlu0 %v1826, 32
    %v2000 = vpop.permute.xlu0 %1999
    %v2001 = vsel %vm192, %v2000, 0
    %2003 = vmatprep.subr.mxu0 0.0
    %2004 = vmatpush1.msra.mxu0 0.0
    %2005 = vmatprep.subr.mxu0 0.0
    %2006 = vmatpush1.msra.mxu0 0.0
    %2007 = vmatprep.subr.mxu0 0.0
    %2008 = vmatpush1.msra.mxu0 0.0
    %2009 = vmatprep.subr.mxu0 0.0
    %2010 = vmatpush1.msra.mxu0 0.0
    %2011 = vmatprep.subr.mxu0 0.0
    %2012 = vmatpush1.msra.mxu0 0.0
    %2013 = vmatprep.subr.mxu0 0.0
    %2014 = vmatpush1.msra.mxu0 0.0
    %2015 = vmatprep.subr.mxu0 0.0
    %2016 = vmatpush1.msra.mxu0 0.0
    %2017 = vmatprep.subr.mxu0 0.0
    %2018 = vmatpush1.msra.mxu0 0.0
    %2019 = vmatprep.subr.mxu0 0.0
    %2020 = vmatpush1.msra.mxu0 0.0
    %2021 = vmatprep.subr.mxu0 0.0
    %2022 = vmatpush1.msra.mxu0 0.0
    %2023 = vmatprep.subr.mxu0 0.0
    %2024 = vmatpush1.msra.mxu0 0.0
    %2025 = vmatprep.subr.mxu0 0.0
    %2026 = vmatpush1.msra.mxu0 0.0
    %2027 = vmatprep.subr.mxu0 0.0
    %2028 = vmatpush1.msra.mxu0 %v40
    %2029 = vmatprep.subr.mxu0 0.0
    %2030 = vmatpush1.msra.mxu0 %v39
    %2031 = vmatprep.subr.mxu0 0.0
    %2032 = vmatpush1.msra.mxu0 %v38
    %2033 = vmatprep.subr.mxu0 0.0
    %2034 = vmatpush1.msra.mxu0 %v37
    %2035 = vmatprep.subr.mxu0 0.0
    %2036 = vmatpush2.msra.mxu0 0.0
    %2037 = vmatprep.subr.mxu0 0.0
    %2038 = vmatpush2.msra.mxu0 0.0
    %2039 = vmatprep.subr.mxu0 0.0
    %2040 = vmatpush2.msra.mxu0 0.0
    %2041 = vmatprep.subr.mxu0 0.0
    %2042 = vmatpush2.msra.mxu0 0.0
    %2043 = vmatprep.subr.mxu0 0.0
    %2044 = vmatpush2.msra.mxu0 0.0
    %2045 = vmatprep.subr.mxu0 0.0
    %2046 = vmatpush2.msra.mxu0 0.0
    %2047 = vmatprep.subr.mxu0 0.0
    %2048 = vmatpush2.msra.mxu0 0.0
    %2049 = vmatprep.subr.mxu0 0.0
    %2050 = vmatpush2.msra.mxu0 0.0
    %2051 = vmatprep.subr.mxu0 0.0
    %2052 = vmatpush2.msra.mxu0 0.0
    %2053 = vmatprep.subr.mxu0 0.0
    %2054 = vmatpush2.msra.mxu0 0.0
    %2055 = vmatprep.subr.mxu0 0.0
    %2056 = vmatpush2.msra.mxu0 0.0
    %2057 = vmatprep.subr.mxu0 0.0
    %2058 = vmatpush2.msra.mxu0 0.0
    %2059 = vmatprep.subr.mxu0 0.0
    %2060 = vmatpush2.msra.mxu0 0.0
    %2061 = vmatprep.subr.mxu0 0.0
    %2062 = vmatpush2.msra.mxu0 0.0
    %2063 = vmatprep.subr.mxu0 0.0
    %2064 = vmatpush2.msra.mxu0 0.0
    %2065 = vmatprep.subr.mxu0 0.0
    %2066 = vmatpush2.msra.mxu0 0.0
    %2067 = vmatprep.mubr.f32.mxu0 0.0
    %2068 = vmatmul.mubr.f32.gmra.mxu0 %v2001
    %v2069 = vpop.f32.mrf.mxu0
    %v2070 = vadd.f32 %v1995, %v2069
    %v2071 = vpop.f32.mrf.mxu0
    %2072 = vdwg.mxu0
    %v2073 = vxor.u32 %v2070, 2147483648
    %v2074 = vmul.f32 %v2073, 1.442695
    %v2075 = vpow.pop %v2074
    %v2076 = vadd.f32 %v2075, 1.0
    %v2077 = vrcp.pop %v2076
    %v2078 = vmul.f32 1.0, %v2077
    %v2079 = vmul.f32 %v2078, 2.0
    %v2080 = vsub.f32 %v2079, 1.0
    %v2081 = vsel %vm49, %v2080, %v2078
    %v2082 = vmul.f32 %v2081, %v1820
    %2084 = vrot.lane.b32.xlu0 %v2081, 64
    %v2085 = vpop.permute.xlu0 %2084
    %v2087 = vmul.f32 %v2081, %v2085
    %2089 = vrot.lane.b32.xlu0 %v2087, 32
    %v2090 = vpop.permute.xlu0 %2089
    %v2092 = vadd.f32 %v2082, %v2090
    %v2093 = vtanh.pop %v2092
    %2095 = vrot.lane.b32.xlu0 %v2093, 64
    %v2096 = vpop.permute.xlu0 %2095
    %v2098 = vmul.f32 %v2081, %v2096
    %2099 = vmatprep.subr.mxu0 0.0
    %2100 = vmatpush1.msra.mxu0 0.0
    %2101 = vmatprep.subr.mxu0 0.0
    %2102 = vmatpush1.msra.mxu0 0.0
    %2103 = vmatprep.subr.mxu0 0.0
    %2104 = vmatpush1.msra.mxu0 0.0
    %2105 = vmatprep.subr.mxu0 0.0
    %2106 = vmatpush1.msra.mxu0 0.0
    %2107 = vmatprep.subr.mxu0 0.0
    %2108 = vmatpush1.msra.mxu0 0.0
    %2109 = vmatprep.subr.mxu0 0.0
    %2110 = vmatpush1.msra.mxu0 0.0
    %2111 = vmatprep.subr.mxu0 0.0
    %2112 = vmatpush1.msra.mxu0 0.0
    %2113 = vmatprep.subr.mxu0 0.0
    %2114 = vmatpush1.msra.mxu0 0.0
    %2115 = vmatprep.subr.mxu0 0.0
    %2116 = vmatpush1.msra.mxu0 0.0
    %2117 = vmatprep.subr.mxu0 0.0
    %2118 = vmatpush1.msra.mxu0 0.0
    %2119 = vmatprep.subr.mxu0 0.0
    %2120 = vmatpush1.msra.mxu0 0.0
    %2121 = vmatprep.subr.mxu0 0.0
    %2122 = vmatpush1.msra.mxu0 0.0
    %2123 = vmatprep.subr.mxu0 0.0
    %2124 = vmatpush1.msra.mxu0 %v32
    %2125 = vmatprep.subr.mxu0 0.0
    %2126 = vmatpush1.msra.mxu0 %v31
    %2127 = vmatprep.subr.mxu0 0.0
    %2128 = vmatpush1.msra.mxu0 %v30
    %2129 = vmatprep.subr.mxu0 0.0
    %2130 = vmatpush1.msra.mxu0 %v29
    %2131 = vmatprep.subr.mxu0 0.0
    %2132 = vmatpush2.msra.mxu0 0.0
    %2133 = vmatprep.subr.mxu0 0.0
    %2134 = vmatpush2.msra.mxu0 0.0
    %2135 = vmatprep.subr.mxu0 0.0
    %2136 = vmatpush2.msra.mxu0 0.0
    %2137 = vmatprep.subr.mxu0 0.0
    %2138 = vmatpush2.msra.mxu0 0.0
    %2139 = vmatprep.subr.mxu0 0.0
    %2140 = vmatpush2.msra.mxu0 0.0
    %2141 = vmatprep.subr.mxu0 0.0
    %2142 = vmatpush2.msra.mxu0 0.0
    %2143 = vmatprep.subr.mxu0 0.0
    %2144 = vmatpush2.msra.mxu0 0.0
    %2145 = vmatprep.subr.mxu0 0.0
    %2146 = vmatpush2.msra.mxu0 0.0
    %2147 = vmatprep.subr.mxu0 0.0
    %2148 = vmatpush2.msra.mxu0 0.0
    %2149 = vmatprep.subr.mxu0 0.0
    %2150 = vmatpush2.msra.mxu0 0.0
    %2151 = vmatprep.subr.mxu0 0.0
    %2152 = vmatpush2.msra.mxu0 0.0
    %2153 = vmatprep.subr.mxu0 0.0
    %2154 = vmatpush2.msra.mxu0 0.0
    %2155 = vmatprep.subr.mxu0 0.0
    %2156 = vmatpush2.msra.mxu0 0.0
    %2157 = vmatprep.subr.mxu0 0.0
    %2158 = vmatpush2.msra.mxu0 0.0
    %2159 = vmatprep.subr.mxu0 0.0
    %2160 = vmatpush2.msra.mxu0 0.0
    %2161 = vmatprep.subr.mxu0 0.0
    %2162 = vmatpush2.msra.mxu0 0.0
    %2163 = vmatprep.mubr.f32.mxu0 0.0
    %2164 = vmatmul.mubr.f32.gmra.mxu0 %v1926
    %v2165 = vpop.f32.mrf.mxu0
    %v2166 = vadd.f32 %v189, %v2165
    %v2167 = vpop.f32.mrf.mxu0
    %2168 = vdwg.mxu0
    %v2169 = vxor.u32 %v2166, 2147483648
    %v2170 = vmul.f32 %v2169, 1.442695
    %v2171 = vpow.pop %v2170
    %v2172 = vadd.f32 %v2171, 1.0
    %v2173 = vrcp.pop %v2172
    %v2174 = vmul.f32 1.0, %v2173
    %v2175 = vmul.f32 %v2174, 2.0
    %v2176 = vsub.f32 %v2175, 1.0
    %v2177 = vsel %vm49, %v2176, %v2174
    %v2178 = vmul.f32 %v2177, %v1916
    %2180 = vrot.lane.b32.xlu0 %v2177, 64
    %v2181 = vpop.permute.xlu0 %2180
    %v2183 = vmul.f32 %v2177, %v2181
    %2185 = vrot.lane.b32.xlu0 %v2183, 32
    %v2186 = vpop.permute.xlu0 %2185
    %v2188 = vadd.f32 %v2178, %v2186
    %v2189 = vtanh.pop %v2188
    %2191 = vrot.lane.b32.xlu0 %v2189, 64
    %v2192 = vpop.permute.xlu0 %2191
    %v2194 = vmul.f32 %v2177, %v2192
    %2196 = vrot.lane.b32.xlu0 %v2194, 32
    %v2197 = vpop.permute.xlu0 %2196
    %v2198 = vsel %vm192, %v2197, 0
    %2200 = vmatprep.subr.mxu0 0.0
    %2201 = vmatpush1.msra.mxu0 0.0
    %2202 = vmatprep.subr.mxu0 0.0
    %2203 = vmatpush1.msra.mxu0 0.0
    %2204 = vmatprep.subr.mxu0 0.0
    %2205 = vmatpush1.msra.mxu0 0.0
    %2206 = vmatprep.subr.mxu0 0.0
    %2207 = vmatpush1.msra.mxu0 0.0
    %2208 = vmatprep.subr.mxu0 0.0
    %2209 = vmatpush1.msra.mxu0 0.0
    %2210 = vmatprep.subr.mxu0 0.0
    %2211 = vmatpush1.msra.mxu0 0.0
    %2212 = vmatprep.subr.mxu0 0.0
    %2213 = vmatpush1.msra.mxu0 0.0
    %2214 = vmatprep.subr.mxu0 0.0
    %2215 = vmatpush1.msra.mxu0 0.0
    %2216 = vmatprep.subr.mxu0 0.0
    %2217 = vmatpush1.msra.mxu0 0.0
    %2218 = vmatprep.subr.mxu0 0.0
    %2219 = vmatpush1.msra.mxu0 0.0
    %2220 = vmatprep.subr.mxu0 0.0
    %2221 = vmatpush1.msra.mxu0 0.0
    %2222 = vmatprep.subr.mxu0 0.0
    %2223 = vmatpush1.msra.mxu0 0.0
    %2224 = vmatprep.subr.mxu0 0.0
    %2225 = vmatpush1.msra.mxu0 %v36
    %2226 = vmatprep.subr.mxu0 0.0
    %2227 = vmatpush1.msra.mxu0 %v35
    %2228 = vmatprep.subr.mxu0 0.0
    %2229 = vmatpush1.msra.mxu0 %v34
    %2230 = vmatprep.subr.mxu0 0.0
    %2231 = vmatpush1.msra.mxu0 %v33
    %2232 = vmatprep.subr.mxu0 0.0
    %2233 = vmatpush2.msra.mxu0 0.0
    %2234 = vmatprep.subr.mxu0 0.0
    %2235 = vmatpush2.msra.mxu0 0.0
    %2236 = vmatprep.subr.mxu0 0.0
    %2237 = vmatpush2.msra.mxu0 0.0
    %2238 = vmatprep.subr.mxu0 0.0
    %2239 = vmatpush2.msra.mxu0 0.0
    %2240 = vmatprep.subr.mxu0 0.0
    %2241 = vmatpush2.msra.mxu0 0.0
    %2242 = vmatprep.subr.mxu0 0.0
    %2243 = vmatpush2.msra.mxu0 0.0
    %2244 = vmatprep.subr.mxu0 0.0
    %2245 = vmatpush2.msra.mxu0 0.0
    %2246 = vmatprep.subr.mxu0 0.0
    %2247 = vmatpush2.msra.mxu0 0.0
    %2248 = vmatprep.subr.mxu0 0.0
    %2249 = vmatpush2.msra.mxu0 0.0
    %2250 = vmatprep.subr.mxu0 0.0
    %2251 = vmatpush2.msra.mxu0 0.0
    %2252 = vmatprep.subr.mxu0 0.0
    %2253 = vmatpush2.msra.mxu0 0.0
    %2254 = vmatprep.subr.mxu0 0.0
    %2255 = vmatpush2.msra.mxu0 0.0
    %2256 = vmatprep.subr.mxu0 0.0
    %2257 = vmatpush2.msra.mxu0 0.0
    %2258 = vmatprep.subr.mxu0 0.0
    %2259 = vmatpush2.msra.mxu0 0.0
    %2260 = vmatprep.subr.mxu0 0.0
    %2261 = vmatpush2.msra.mxu0 0.0
    %2262 = vmatprep.subr.mxu0 0.0
    %2263 = vmatpush2.msra.mxu0 0.0
    %2264 = vmatprep.mubr.f32.mxu0 0.0
    %2265 = vmatmul.mubr.f32.gmra.mxu0 %v2198
    %v2266 = vpop.f32.mrf.mxu0
    %v2267 = vadd.f32 %v295, %v2266
    %v2268 = vpop.f32.mrf.mxu0
    %2269 = vdwg.mxu0
    %2271 = vrot.lane.b32.xlu0 %v2098, 32
    %v2272 = vpop.permute.xlu0 %2271
    %v2273 = vsel %vm192, %v2272, 0
    %2275 = vmatprep.subr.mxu0 0.0
    %2276 = vmatpush1.msra.mxu0 0.0
    %2277 = vmatprep.subr.mxu0 0.0
    %2278 = vmatpush1.msra.mxu0 0.0
    %2279 = vmatprep.subr.mxu0 0.0
    %2280 = vmatpush1.msra.mxu0 0.0
    %2281 = vmatprep.subr.mxu0 0.0
    %2282 = vmatpush1.msra.mxu0 0.0
    %2283 = vmatprep.subr.mxu0 0.0
    %2284 = vmatpush1.msra.mxu0 0.0
    %2285 = vmatprep.subr.mxu0 0.0
    %2286 = vmatpush1.msra.mxu0 0.0
    %2287 = vmatprep.subr.mxu0 0.0
    %2288 = vmatpush1.msra.mxu0 0.0
    %2289 = vmatprep.subr.mxu0 0.0
    %2290 = vmatpush1.msra.mxu0 0.0
    %2291 = vmatprep.subr.mxu0 0.0
    %2292 = vmatpush1.msra.mxu0 0.0
    %2293 = vmatprep.subr.mxu0 0.0
    %2294 = vmatpush1.msra.mxu0 0.0
    %2295 = vmatprep.subr.mxu0 0.0
    %2296 = vmatpush1.msra.mxu0 0.0
    %2297 = vmatprep.subr.mxu0 0.0
    %2298 = vmatpush1.msra.mxu0 0.0
    %2299 = vmatprep.subr.mxu0 0.0
    %2300 = vmatpush1.msra.mxu0 %v40
    %2301 = vmatprep.subr.mxu0 0.0
    %2302 = vmatpush1.msra.mxu0 %v39
    %2303 = vmatprep.subr.mxu0 0.0
    %2304 = vmatpush1.msra.mxu0 %v38
    %2305 = vmatprep.subr.mxu0 0.0
    %2306 = vmatpush1.msra.mxu0 %v37
    %2307 = vmatprep.subr.mxu0 0.0
    %2308 = vmatpush2.msra.mxu0 0.0
    %2309 = vmatprep.subr.mxu0 0.0
    %2310 = vmatpush2.msra.mxu0 0.0
    %2311 = vmatprep.subr.mxu0 0.0
    %2312 = vmatpush2.msra.mxu0 0.0
    %2313 = vmatprep.subr.mxu0 0.0
    %2314 = vmatpush2.msra.mxu0 0.0
    %2315 = vmatprep.subr.mxu0 0.0
    %2316 = vmatpush2.msra.mxu0 0.0
    %2317 = vmatprep.subr.mxu0 0.0
    %2318 = vmatpush2.msra.mxu0 0.0
    %2319 = vmatprep.subr.mxu0 0.0
    %2320 = vmatpush2.msra.mxu0 0.0
    %2321 = vmatprep.subr.mxu0 0.0
    %2322 = vmatpush2.msra.mxu0 0.0
    %2323 = vmatprep.subr.mxu0 0.0
    %2324 = vmatpush2.msra.mxu0 0.0
    %2325 = vmatprep.subr.mxu0 0.0
    %2326 = vmatpush2.msra.mxu0 0.0
    %2327 = vmatprep.subr.mxu0 0.0
    %2328 = vmatpush2.msra.mxu0 0.0
    %2329 = vmatprep.subr.mxu0 0.0
    %2330 = vmatpush2.msra.mxu0 0.0
    %2331 = vmatprep.subr.mxu0 0.0
    %2332 = vmatpush2.msra.mxu0 0.0
    %2333 = vmatprep.subr.mxu0 0.0
    %2334 = vmatpush2.msra.mxu0 0.0
    %2335 = vmatprep.subr.mxu0 0.0
    %2336 = vmatpush2.msra.mxu0 0.0
    %2337 = vmatprep.subr.mxu0 0.0
    %2338 = vmatpush2.msra.mxu0 0.0
    %2339 = vmatprep.mubr.f32.mxu0 0.0
    %2340 = vmatmul.mubr.f32.gmra.mxu0 %v2273
    %v2341 = vpop.f32.mrf.mxu0
    %v2342 = vadd.f32 %v2267, %v2341
    %v2343 = vpop.f32.mrf.mxu0
    %2344 = vdwg.mxu0
    %v2345 = vxor.u32 %v2342, 2147483648
    %v2346 = vmul.f32 %v2345, 1.442695
    %v2347 = vpow.pop %v2346
    %v2348 = vadd.f32 %v2347, 1.0
    %v2349 = vrcp.pop %v2348
    %v2350 = vmul.f32 1.0, %v2349
    %v2351 = vmul.f32 %v2350, 2.0
    %v2352 = vsub.f32 %v2351, 1.0
    %v2353 = vsel %vm49, %v2352, %v2350
    %v2354 = vmul.f32 %v2353, %v2092
    %2356 = vrot.lane.b32.xlu0 %v2353, 64
    %v2357 = vpop.permute.xlu0 %2356
    %v2359 = vmul.f32 %v2353, %v2357
    %2361 = vrot.lane.b32.xlu0 %v2359, 32
    %v2362 = vpop.permute.xlu0 %2361
    %v2364 = vadd.f32 %v2354, %v2362
    %v2365 = vtanh.pop %v2364
    %2367 = vrot.lane.b32.xlu0 %v2365, 64
    %v2368 = vpop.permute.xlu0 %2367
    %v2370 = vmul.f32 %v2353, %v2368
    %v2371 = vlaneseq
    %v2372 = vshrl.u32 %v2371, 7
    %v2373 = vsub.s32 0, %v2372
    %v2374 = vrot.slane %v43, %v2373
    %2376 = vrot.lane.b32.xlu0 %v2374, 96
    %v2377 = vpop.permute.xlu0 %2376
    %v2379 = vmul.f32 %v2370, %v2377
    %2381 = vrot.lane.b32.xlu0 %v2379, 32
    %v2382 = vpop.permute.xlu0 %2381
    %v2384 = vsel %vm192, %v2382, 0.0
    %2385 = vadd.xlane.f32.xlu0 %v2384
    %v2386 = vpop.xlane.xlu0 %2385
    %v2387 = vlaneseq
    %v2388 = vshrl.u32 %v2387, 7
    %v2389 = vsub.s32 0, %v2388
    %v2390 = vrot.slane %v44, %v2389
    %v2391 = vadd.f32 %v2386, %v2390
    %vm2392 = vcmask 7168
    %2393 = vst.msk [vmem:[%s3] sm:$0xff] %vm2392, %v2391
    // Predicated region
    $region18: #{tpu_custom_call.1} parent=1 // pred_check
      _
    $region19: #{tpu_custom_call.1} parent=1 // pred_check_branch
      %2395 = sbr.rel (0) target = $region21
    $region20: #{tpu_custom_call.1} parent=1 // pred_region
      _
    $region21: #{tpu_custom_call.1} parent=1 // pred_fallthru
      _
    // Predicated region
    $region22: #{tpu_custom_call.1} parent=1 // pred_check
      _
    $region23: #{tpu_custom_call.1} parent=1 // pred_check_branch
      %2397 = sbr.rel (0) target = $region25
    $region24: #{tpu_custom_call.1} parent=1 // pred_region
      _
    $region25: #{tpu_custom_call.1} parent=1 // pred_fallthru
      _
    %2398 = vsyncpa [#allocation3], 1

</llo_original>
